<compile_context>
chip_gen: v6e
topology: v6e:2x2x1
jax: 0.10.0
libtpu: 0.0.40
codegen_flags: <defaults>
</compile_context>

<pallas_src>
import jax
import jax.numpy as jnp
from jax.experimental import pallas as pl
from jax.experimental.pallas import tpu as pltpu

LAYER_NORM_EPS = 1e-12


def bert_output_kernel(h_ref, res_ref, w_ref, b_ref, gamma_ref, beta_ref, o_ref):
    # Cast the activation tile to bf16 in-kernel (VPU filler slot, no extra HBM pass);
    # the weight is already bf16-resident in VMEM.  Accumulate in f32 on the MXU.
    h = h_ref[...].astype(jnp.bfloat16)
    x = jnp.dot(h, w_ref[...], preferred_element_type=jnp.float32)
    # Bias + residual add; residual upcast in-kernel.  Dropout is identity (eval mode).
    x = x + b_ref[...] + res_ref[...].astype(jnp.float32)
    # LayerNorm over the hidden (last) dimension, all in f32.
    mean = jnp.mean(x, axis=-1, keepdims=True)
    centered = x - mean
    var = jnp.mean(centered * centered, axis=-1, keepdims=True)
    y = centered * jax.lax.rsqrt(var + LAYER_NORM_EPS)
    o_ref[...] = (y * gamma_ref[...] + beta_ref[...]).astype(o_ref.dtype)


def _round_up(x, m):
    return ((x + m - 1) // m) * m


def bert_output(hidden_states, input_tensor, w, b, gamma, beta, *,
                tm=512, vmem_limit_bytes=48 * 1024 * 1024):
    """hidden_states: [M, K], input_tensor: [M, N], w: [K, N], b/gamma/beta: [N].

    tm: row tile.  512 is the sweet spot on v6e; it is shrunk automatically for
    small M (and the last block may be partial — Pallas masks it, no padding).
    vmem_limit_bytes: 48 MiB default leaves internal-scratch headroom under v7x's
    64 MiB physical VMEM and is plenty on v5e/v6e (128 MiB).
    """
    M, K = hidden_states.shape
    N = input_tensor.shape[-1]
    out_dtype = jnp.promote_types(hidden_states.dtype, input_tensor.dtype)

    # Row-tile selection: respect the (8,128) layout constraint (16-row sublane
    # packing for bf16 activations), and keep >=2 grid steps when possible so both
    # v7x TensorCores get work along the "parallel" axis.
    row_align = 16 if hidden_states.dtype == jnp.bfloat16 else 8
    candidate = min(tm, _round_up(pl.cdiv(M, 2), row_align))
    candidate = max(row_align, (candidate // row_align) * row_align)
    tm_eff = M if candidate >= M else candidate
    grid = (pl.cdiv(M, tm_eff),)

    # The [K, N] weight is tiny relative to the [M, K] activations; casting it once
    # in the wrapper halves its resident VMEM footprint and its HBM->VMEM DMA.
    # TODO(synk): int8 (v5e) / fp8 (v7x) resident-weight path would lift the MXU
    # roofline further but needs accuracy validation; keeping bf16.
    w_bf16 = w.astype(jnp.bfloat16)
    b2 = b.astype(jnp.float32).reshape(1, N)
    gamma2 = gamma.astype(jnp.float32).reshape(1, N)
    beta2 = beta.astype(jnp.float32).reshape(1, N)

    def _call(single_buffer_resident):
        # Grid-invariant operands: constant index_map => no re-DMA across row tiles;
        # request a single buffer to avoid the pointless double-buffer copy.
        res_kwargs = {"pipeline_mode": pl.Buffered(1)} if single_buffer_resident else {}
        grid_spec = pltpu.PrefetchScalarGridSpec(
            num_scalar_prefetch=0,
            grid=grid,
            in_specs=[
                pl.BlockSpec((tm_eff, K), lambda i: (i, 0)),               # activations (native dtype)
                pl.BlockSpec((tm_eff, N), lambda i: (i, 0)),               # residual (native dtype)
                pl.BlockSpec((K, N), lambda i: (0, 0), **res_kwargs),      # dense weight (bf16, resident)
                pl.BlockSpec((1, N), lambda i: (0, 0), **res_kwargs),      # dense bias
                pl.BlockSpec((1, N), lambda i: (0, 0), **res_kwargs),      # LN gamma
                pl.BlockSpec((1, N), lambda i: (0, 0), **res_kwargs),      # LN beta
            ],
            out_specs=pl.BlockSpec((tm_eff, N), lambda i: (i, 0)),
        )
        return pl.pallas_call(
            bert_output_kernel,
            out_shape=jax.ShapeDtypeStruct((M, N), out_dtype),
            grid_spec=grid_spec,
            compiler_params=pltpu.CompilerParams(
                dimension_semantics=("parallel",),
                vmem_limit_bytes=vmem_limit_bytes,
            ),
        )(hidden_states, input_tensor, w_bf16, b2, gamma2, beta2)

    try:
        return _call(True)
    except Exception:
        # Version-compat fallback: if pipeline_mode / Buffered(1) isn't supported for
        # top-level pallas_call operands on this jax build, run with default (double)
        # buffering — only costs the extra resident-weight buffer copy in VMEM.
        return _call(False)


def reference(hidden_states, input_tensor, w, b, gamma, beta):
    # Matches the kernel's precision policy: bf16 matmul operands, f32 accumulation,
    # f32 LayerNorm math.
    x = jnp.dot(hidden_states.astype(jnp.bfloat16), w.astype(jnp.bfloat16),
                preferred_element_type=jnp.float32)
    x = x + b + input_tensor.astype(jnp.float32)
    mean = jnp.mean(x, axis=-1, keepdims=True)
    var = jnp.mean((x - mean) ** 2, axis=-1, keepdims=True)
    y = (x - mean) / jnp.sqrt(var + LAYER_NORM_EPS)
    out_dtype = jnp.promote_types(hidden_states.dtype, input_tensor.dtype)
    return (y * gamma + beta).astype(out_dtype)


if __name__ == "__main__":
    # Small but lane-dense config: batch=2, seq=8, intermediate_size=512, hidden_size=128.
    # (Production BERT shapes — K=3072, N=768, M in the thousands — use the same wrapper
    #  with the default tm=512; here tm auto-shrinks to 8 so the grid has 2 steps.)
    batch, seq = 2, 8
    intermediate_size, hidden_size = 512, 128
    M = batch * seq

    key = jax.random.PRNGKey(0)
    k1, k2, k3, k4 = jax.random.split(key, 4)

    hidden_states = jax.random.normal(k1, (M, intermediate_size), dtype=jnp.float32)
    input_tensor = jax.random.normal(k2, (M, hidden_size), dtype=jnp.float32)

    # Deterministic parameter init (synthetic, not a checkpoint load).
    w = jax.random.normal(k3, (intermediate_size, hidden_size), dtype=jnp.float32) * 0.02
    b = jax.random.normal(k4, (hidden_size,), dtype=jnp.float32) * 0.02
    gamma = jnp.ones((hidden_size,), dtype=jnp.float32)
    beta = jnp.zeros((hidden_size,), dtype=jnp.float32)

    # TODO(synk): nn.Dropout(hidden_dropout_prob) is train-time only; implemented as identity (eval mode).
    out = bert_output(hidden_states, input_tensor, w, b, gamma, beta)
    out = jax.block_until_ready(out)

    ref = reference(hidden_states, input_tensor, w, b, gamma, beta)
    assert out.shape == (M, hidden_size)
    assert out.dtype == ref.dtype
    assert jnp.allclose(out, ref, atol=1e-3, rtol=1e-3), "mismatch vs reference"

    print("KERNEL_OK")
</pallas_src>

<mosaic_0001>
module attributes {stable_mosaic.version = 11 : i64} {
  func.func @bert_output_kernel(%arg0: i32, %arg1: memref<8x512xf32, #tpu.memory_space<vmem>>, %arg2: memref<8x128xf32, #tpu.memory_space<vmem>>, %arg3: memref<512x128xbf16, #tpu.memory_space<vmem>>, %arg4: memref<1x128xf32, #tpu.memory_space<vmem>>, %arg5: memref<1x128xf32, #tpu.memory_space<vmem>>, %arg6: memref<1x128xf32, #tpu.memory_space<vmem>>, %arg7: memref<8x128xf32, #tpu.memory_space<vmem>>) attributes {dimension_semantics = [#tpu.dimension_semantics<parallel>], iteration_bounds = array<i64: 2>, scalar_prefetch = 0 : i64, scratch_operands = 0 : i64, tpu.core_type = #tpu.core_type<tc>, window_params = [{transform_indices = @transform_0, window_bounds = array<i64: 8, 512>}, {transform_indices = @transform_1, window_bounds = array<i64: 8, 128>}, {pipeline_mode = #tpu.pipeline_mode<synchronous>, transform_indices = @transform_2, window_bounds = array<i64: 512, 128>}, {pipeline_mode = #tpu.pipeline_mode<synchronous>, transform_indices = @transform_3, window_bounds = array<i64: 1, 128>}, {pipeline_mode = #tpu.pipeline_mode<synchronous>, transform_indices = @transform_4, window_bounds = array<i64: 1, 128>}, {pipeline_mode = #tpu.pipeline_mode<synchronous>, transform_indices = @transform_5, window_bounds = array<i64: 1, 128>}, {transform_indices = @transform_6, window_bounds = array<i64: 8, 128>}]} {
    %c0 = arith.constant 0 : index
    %c0_0 = arith.constant 0 : index
    %0 = vector.load %arg1[%c0, %c0_0] : memref<8x512xf32, #tpu.memory_space<vmem>>, vector<8x512xf32>
    %1 = arith.truncf %0 : vector<8x512xf32> to vector<8x512xbf16>
    %c0_1 = arith.constant 0 : index
    %c0_2 = arith.constant 0 : index
    %2 = vector.load %arg3[%c0_1, %c0_2] : memref<512x128xbf16, #tpu.memory_space<vmem>>, vector<512x128xbf16>
    %cst = arith.constant dense<0.000000e+00> : vector<8x128xf32>
    %3 = tpu.matmul %1, %2, %cst {dimension_numbers = #tpu.dot_dimension_numbers<[1], [0], [0], [1], [0, 0, 1, 1], [], []>} : vector<8x512xbf16>, vector<512x128xbf16>, vector<8x128xf32> -> vector<8x128xf32>
    %c0_3 = arith.constant 0 : index
    %c0_4 = arith.constant 0 : index
    %4 = vector.load %arg4[%c0_3, %c0_4] : memref<1x128xf32, #tpu.memory_space<vmem>>, vector<1x128xf32>
    %5 = vector.broadcast %4 : vector<1x128xf32> to vector<8x128xf32>
    %6 = arith.addf %3, %5 : vector<8x128xf32>
    %c0_5 = arith.constant 0 : index
    %c0_6 = arith.constant 0 : index
    %7 = vector.load %arg2[%c0_5, %c0_6] : memref<8x128xf32, #tpu.memory_space<vmem>>, vector<8x128xf32>
    %8 = arith.addf %6, %7 : vector<8x128xf32>
    %cst_7 = arith.constant dense<0.000000e+00> : vector<8xf32>
    %9 = vector.multi_reduction <add>, %8, %cst_7 [1] : vector<8x128xf32> to vector<8xf32>
    %10 = vector.shape_cast %9 : vector<8xf32> to vector<8x1xf32>
    %cst_8 = arith.constant 1.280000e+02 : f32
    %11 = vector.broadcast %cst_8 : f32 to vector<8x1xf32>
    %12 = arith.divf %10, %11 : vector<8x1xf32>
    %13 = vector.broadcast %12 : vector<8x1xf32> to vector<8x128xf32>
    %14 = arith.subf %8, %13 : vector<8x128xf32>
    %15 = arith.mulf %14, %14 : vector<8x128xf32>
    %cst_9 = arith.constant dense<0.000000e+00> : vector<8xf32>
    %16 = vector.multi_reduction <add>, %15, %cst_9 [1] : vector<8x128xf32> to vector<8xf32>
    %17 = vector.shape_cast %16 : vector<8xf32> to vector<8x1xf32>
    %cst_10 = arith.constant 1.280000e+02 : f32
    %18 = vector.broadcast %cst_10 : f32 to vector<8x1xf32>
    %19 = arith.divf %17, %18 : vector<8x1xf32>
    %cst_11 = arith.constant 9.99999996E-13 : f32
    %20 = vector.broadcast %cst_11 : f32 to vector<8x1xf32>
    %21 = arith.addf %19, %20 : vector<8x1xf32>
    %22 = math.rsqrt %21 : vector<8x1xf32>
    %23 = vector.broadcast %22 : vector<8x1xf32> to vector<8x128xf32>
    %24 = arith.mulf %14, %23 : vector<8x128xf32>
    %c0_12 = arith.constant 0 : index
    %c0_13 = arith.constant 0 : index
    %25 = vector.load %arg5[%c0_12, %c0_13] : memref<1x128xf32, #tpu.memory_space<vmem>>, vector<1x128xf32>
    %26 = vector.broadcast %25 : vector<1x128xf32> to vector<8x128xf32>
    %27 = arith.mulf %24, %26 : vector<8x128xf32>
    %c0_14 = arith.constant 0 : index
    %c0_15 = arith.constant 0 : index
    %28 = vector.load %arg6[%c0_14, %c0_15] : memref<1x128xf32, #tpu.memory_space<vmem>>, vector<1x128xf32>
    %29 = vector.broadcast %28 : vector<1x128xf32> to vector<8x128xf32>
    %30 = arith.addf %27, %29 : vector<8x128xf32>
    %c0_16 = arith.constant 0 : index
    %c0_17 = arith.constant 0 : index
    %31 = vector.load %arg7[%c0_16, %c0_17] : memref<8x128xf32, #tpu.memory_space<vmem>>, vector<8x128xf32>
    tpu.vector_store %arg7[%c0_16, %c0_17], %30 {strides = array<i32>} : memref<8x128xf32, #tpu.memory_space<vmem>>, vector<8x128xf32>,
    return
  }
  func.func @transform_0(%arg0: i32) -> (i32, i32) {
    %c0_i32 = arith.constant 0 : i32
    %c0_i32_0 = arith.constant 0 : i32
    return %arg0, %c0_i32 : i32, i32
  }
  func.func @transform_1(%arg0: i32) -> (i32, i32) {
    %c0_i32 = arith.constant 0 : i32
    %c0_i32_0 = arith.constant 0 : i32
    return %arg0, %c0_i32 : i32, i32
  }
  func.func @transform_2(%arg0: i32) -> (i32, i32) {
    %c0_i32 = arith.constant 0 : i32
    %c0_i32_0 = arith.constant 0 : i32
    %c0_i32_1 = arith.constant 0 : i32
    return %c0_i32, %c0_i32_0 : i32, i32
  }
  func.func @transform_3(%arg0: i32) -> (i32, i32) {
    %c0_i32 = arith.constant 0 : i32
    %c0_i32_0 = arith.constant 0 : i32
    %c0_i32_1 = arith.constant 0 : i32
    return %c0_i32, %c0_i32_0 : i32, i32
  }
  func.func @transform_4(%arg0: i32) -> (i32, i32) {
    %c0_i32 = arith.constant 0 : i32
    %c0_i32_0 = arith.constant 0 : i32
    %c0_i32_1 = arith.constant 0 : i32
    return %c0_i32, %c0_i32_0 : i32, i32
  }
  func.func @transform_5(%arg0: i32) -> (i32, i32) {
    %c0_i32 = arith.constant 0 : i32
    %c0_i32_0 = arith.constant 0 : i32
    %c0_i32_1 = arith.constant 0 : i32
    return %c0_i32, %c0_i32_0 : i32, i32
  }
  func.func @transform_6(%arg0: i32) -> (i32, i32) {
    %c0_i32 = arith.constant 0 : i32
    %c0_i32_0 = arith.constant 0 : i32
    return %arg0, %c0_i32 : i32, i32
  }
}

module attributes {stable_mosaic.version = 11 : i64} {
  func.func @bert_output_kernel(%arg0: i32, %arg1: memref<8x512xf32, #tpu.memory_space<vmem>>, %arg2: memref<8x128xf32, #tpu.memory_space<vmem>>, %arg3: memref<512x128xbf16, #tpu.memory_space<vmem>>, %arg4: memref<1x128xf32, #tpu.memory_space<vmem>>, %arg5: memref<1x128xf32, #tpu.memory_space<vmem>>, %arg6: memref<1x128xf32, #tpu.memory_space<vmem>>, %arg7: memref<8x128xf32, #tpu.memory_space<vmem>>) attributes {dimension_semantics = [#tpu.dimension_semantics<parallel>], iteration_bounds = array<i64: 2>, scalar_prefetch = 0 : i64, scratch_operands = 0 : i64, tpu.core_type = #tpu.core_type<tc>, window_params = [{transform_indices = @transform_0, window_bounds = array<i64: 8, 512>}, {transform_indices = @transform_1, window_bounds = array<i64: 8, 128>}, {pipeline_mode = #tpu.pipeline_mode<synchronous>, transform_indices = @transform_2, window_bounds = array<i64: 512, 128>}, {pipeline_mode = #tpu.pipeline_mode<synchronous>, transform_indices = @transform_3, window_bounds = array<i64: 1, 128>}, {pipeline_mode = #tpu.pipeline_mode<synchronous>, transform_indices = @transform_4, window_bounds = array<i64: 1, 128>}, {pipeline_mode = #tpu.pipeline_mode<synchronous>, transform_indices = @transform_5, window_bounds = array<i64: 1, 128>}, {transform_indices = @transform_6, window_bounds = array<i64: 8, 128>}]} {
    %c0 = arith.constant 0 : index
    %c0_0 = arith.constant 0 : index
    %0 = vector.load %arg1[%c0, %c0_0] : memref<8x512xf32, #tpu.memory_space<vmem>>, vector<8x512xf32>
    %1 = arith.truncf %0 : vector<8x512xf32> to vector<8x512xbf16>
    %c0_1 = arith.constant 0 : index
    %c0_2 = arith.constant 0 : index
    %2 = vector.load %arg3[%c0_1, %c0_2] : memref<512x128xbf16, #tpu.memory_space<vmem>>, vector<512x128xbf16>
    %cst = arith.constant dense<0.000000e+00> : vector<8x128xf32>
    %3 = tpu.matmul %1, %2, %cst {dimension_numbers = #tpu.dot_dimension_numbers<[1], [0], [0], [1], [0, 0, 1, 1], [], []>} : vector<8x512xbf16>, vector<512x128xbf16>, vector<8x128xf32> -> vector<8x128xf32>
    %c0_3 = arith.constant 0 : index
    %c0_4 = arith.constant 0 : index
    %4 = vector.load %arg4[%c0_3, %c0_4] : memref<1x128xf32, #tpu.memory_space<vmem>>, vector<1x128xf32>
    %5 = vector.broadcast %4 : vector<1x128xf32> to vector<8x128xf32>
    %6 = arith.addf %3, %5 : vector<8x128xf32>
    %c0_5 = arith.constant 0 : index
    %c0_6 = arith.constant 0 : index
    %7 = vector.load %arg2[%c0_5, %c0_6] : memref<8x128xf32, #tpu.memory_space<vmem>>, vector<8x128xf32>
    %8 = arith.addf %6, %7 : vector<8x128xf32>
    %cst_7 = arith.constant dense<0.000000e+00> : vector<8xf32>
    %9 = vector.multi_reduction <add>, %8, %cst_7 [1] : vector<8x128xf32> to vector<8xf32>
    %10 = vector.shape_cast %9 : vector<8xf32> to vector<8x1xf32>
    %cst_8 = arith.constant 1.280000e+02 : f32
    %11 = vector.broadcast %cst_8 : f32 to vector<8x1xf32>
    %12 = arith.divf %10, %11 : vector<8x1xf32>
    %13 = vector.broadcast %12 : vector<8x1xf32> to vector<8x128xf32>
    %14 = arith.subf %8, %13 : vector<8x128xf32>
    %15 = arith.mulf %14, %14 : vector<8x128xf32>
    %cst_9 = arith.constant dense<0.000000e+00> : vector<8xf32>
    %16 = vector.multi_reduction <add>, %15, %cst_9 [1] : vector<8x128xf32> to vector<8xf32>
    %17 = vector.shape_cast %16 : vector<8xf32> to vector<8x1xf32>
    %cst_10 = arith.constant 1.280000e+02 : f32
    %18 = vector.broadcast %cst_10 : f32 to vector<8x1xf32>
    %19 = arith.divf %17, %18 : vector<8x1xf32>
    %cst_11 = arith.constant 9.99999996E-13 : f32
    %20 = vector.broadcast %cst_11 : f32 to vector<8x1xf32>
    %21 = arith.addf %19, %20 : vector<8x1xf32>
    %22 = math.rsqrt %21 : vector<8x1xf32>
    %23 = vector.broadcast %22 : vector<8x1xf32> to vector<8x128xf32>
    %24 = arith.mulf %14, %23 : vector<8x128xf32>
    %c0_12 = arith.constant 0 : index
    %c0_13 = arith.constant 0 : index
    %25 = vector.load %arg5[%c0_12, %c0_13] : memref<1x128xf32, #tpu.memory_space<vmem>>, vector<1x128xf32>
    %26 = vector.broadcast %25 : vector<1x128xf32> to vector<8x128xf32>
    %27 = arith.mulf %24, %26 : vector<8x128xf32>
    %c0_14 = arith.constant 0 : index
    %c0_15 = arith.constant 0 : index
    %28 = vector.load %arg6[%c0_14, %c0_15] : memref<1x128xf32, #tpu.memory_space<vmem>>, vector<1x128xf32>
    %29 = vector.broadcast %28 : vector<1x128xf32> to vector<8x128xf32>
    %30 = arith.addf %27, %29 : vector<8x128xf32>
    %c0_16 = arith.constant 0 : index
    %c0_17 = arith.constant 0 : index
    %31 = vector.load %arg7[%c0_16, %c0_17] : memref<8x128xf32, #tpu.memory_space<vmem>>, vector<8x128xf32>
    tpu.vector_store %arg7[%c0_16, %c0_17], %30 {strides = array<i32>} : memref<8x128xf32, #tpu.memory_space<vmem>>, vector<8x128xf32>,
    return
  }
  func.func @transform_0(%arg0: i32) -> (i32, i32) {
    %c0_i32 = arith.constant 0 : i32
    %c0_i32_0 = arith.constant 0 : i32
    return %arg0, %c0_i32 : i32, i32
  }
  func.func @transform_1(%arg0: i32) -> (i32, i32) {
    %c0_i32 = arith.constant 0 : i32
    %c0_i32_0 = arith.constant 0 : i32
    return %arg0, %c0_i32 : i32, i32
  }
  func.func @transform_2(%arg0: i32) -> (i32, i32) {
    %c0_i32 = arith.constant 0 : i32
    %c0_i32_0 = arith.constant 0 : i32
    %c0_i32_1 = arith.constant 0 : i32
    return %c0_i32, %c0_i32_0 : i32, i32
  }
  func.func @transform_3(%arg0: i32) -> (i32, i32) {
    %c0_i32 = arith.constant 0 : i32
    %c0_i32_0 = arith.constant 0 : i32
    %c0_i32_1 = arith.constant 0 : i32
    return %c0_i32, %c0_i32_0 : i32, i32
  }
  func.func @transform_4(%arg0: i32) -> (i32, i32) {
    %c0_i32 = arith.constant 0 : i32
    %c0_i32_0 = arith.constant 0 : i32
    %c0_i32_1 = arith.constant 0 : i32
    return %c0_i32, %c0_i32_0 : i32, i32
  }
  func.func @transform_5(%arg0: i32) -> (i32, i32) {
    %c0_i32 = arith.constant 0 : i32
    %c0_i32_0 = arith.constant 0 : i32
    %c0_i32_1 = arith.constant 0 : i32
    return %c0_i32, %c0_i32_0 : i32, i32
  }
  func.func @transform_6(%arg0: i32) -> (i32, i32) {
    %c0_i32 = arith.constant 0 : i32
    %c0_i32_0 = arith.constant 0 : i32
    return %arg0, %c0_i32 : i32, i32
  }
}

</mosaic_0001>

<llo_original>
// kernel: tpu_custom_call.1
$region0: #{tpu_custom_call.1}
  #allocation0 [shape = 'u32[]', space=smem, size = 0x4, offset = 0x4, fixed_abs, tag = 'smem constant byte address 0x4 - core index']
  #allocation1 [shape = 'u32[144,128]{1,0:T(1,128)}', space=vmem, size = 0x12000, scoped, tag = 'internal scratch']
  %s0 = inlined_call_operand.hbm [shape: f32[16,512], index: 0, kind: input, shape index: {}]
  %s1 = inlined_call_operand.hbm [shape: f32[16,128], index: 1, kind: input, shape index: {}]
  %s2 = inlined_call_operand.hbm [shape: bf16[512,128], index: 2, kind: input, shape index: {}]
  %s3 = inlined_call_operand.vmem [shape: f32[1,128], index: 3, kind: input, shape index: {}]
  %s4 = inlined_call_operand.vmem [shape: f32[1,128], index: 4, kind: input, shape index: {}]
  %s5 = inlined_call_operand.vmem [shape: f32[1,128], index: 5, kind: input, shape index: {}]
  %s6 = inlined_call_operand.hbm [shape: f32[16,128], index: 6, kind: output, shape index: {}]
  %s7 = sld [smem:[#allocation0]]
  $region69: #{tpu_custom_call.1} parent=0
    _
  %s9 = ssub.s32 1, %s7
  %s10 = scalar_select 0, %s9, %s7
  $region1: #{tpu_custom_call.1} parent=0
    #allocation2 [shape = 'u8[32768]{0}', space=vmem, size = 0x8000, scoped, tag = 'input window, operand 0']
    #allocation3 [shape = 's32[2]{0}', space=sflag, size = 0x8, scoped, tag = 'scoped memory for tpu_custom_call.1']
    #allocation4 [shape = 's32[2]{0}', space=sflag, size = 0x8, scoped, tag = 'scoped memory for tpu_custom_call.1']
    #allocation5 [shape = 'u8[8192]{0}', space=vmem, size = 0x2000, scoped, tag = 'input window, operand 1']
    #allocation6 [shape = 's32[2]{0}', space=sflag, size = 0x8, scoped, tag = 'scoped memory for tpu_custom_call.1']
    #allocation7 [shape = 'u8[131072]{0}', space=vmem, size = 0x20000, scoped, tag = 'input window, operand 2, single buffered']
    #allocation8 [shape = 'u8[8192]{0}', space=vmem, size = 0x2000, scoped, tag = 'output window, operand 0']
    %11 = vsyncpa [#allocation3], 0
    %s12 = scalar_lea.sflag [#allocation3], 1
    %13 = vsyncpa %s12, 0
    %14 = vsyncpa [#allocation6], 0
    %s15 = scalar_lea.sflag [#allocation6], 1
    %16 = vsyncpa %s15, 0
    %17 = vsyncpa [#allocation4], 0
    %s18 = scalar_lea.sflag [#allocation4], 1
    %19 = vsyncpa %s18, 0
    loop: start=0, step=1, limit=4
    $region2: #{tpu_custom_call.1} parent=1 // loop_pre_header
      _
    $region3: #{tpu_custom_call.1} parent=1 // loop_header
      %s21 = sphi 0, %s25
      %p22 = scmp.ge.s32.totalorder %s21, 4
      %s31 = sphi 0, %s33
      %s34 = sphi 0, %s31
      %s35 = sphi 0, %s34
      %s51 = sphi 0, %s35
      %s57 = sphi 0, %s59
      %s60 = sphi 0, %s57
      %s61 = sphi 0, %s60
      %s77 = sphi 0, %s61
      %s81 = sphi 0, %s81
      %s83 = sphi 0, %s81
      %s84 = sphi 0, %s83
      %s98 = sphi 0, %s84
      %s102 = sphi 0, %s102
      %s104 = sphi 0, %s102
      %s105 = sphi 0, %s104
      %s119 = sphi 0, %s105
      %s123 = sphi 0, %s123
      %s125 = sphi 0, %s123
      %s126 = sphi 0, %s125
      %s140 = sphi 0, %s126
      %s144 = sphi 0, %s144
      %s146 = sphi 0, %s144
      %s147 = sphi 0, %s146
      %s161 = sphi 0, %s147
      %s167 = sphi 0, %s169
      %s170 = sphi 0, %s167
      %s171 = sphi 0, %s170
      %s187 = sphi 0, %s171
    $region4: #{tpu_custom_call.1} parent=1 // loop_header_branch
      %24 = sbr.rel (%p22) target = $region8
    $region5: #{tpu_custom_call.1} parent=1 // loop_body
      %s26 = ssub.s32 %s21, 1
      %s27 = ssub.s32 %s21, 2
      %s28 = sadd.s32 %s21, 1
      %s29 = ssub.s32 %s21, %s28
      %p30 = scmp.eq.s32.totalorder %s29, 0
      %s32 = sadd.s32 %s31, 1
      %s33 = scalar_select %p30, %s31, %s32
      %p36 = pneg %p30
      %p37 = scmp.eq.s32.totalorder %s21, 1
      %p38 = por %p36, %p37
      %p39 = scmp.ne.s32.totalorder %s31, %s34
      %p40 = scmp.eq.s32.totalorder %s21, 0
      %p41 = por %p39, %p40
      %p42 = scmp.ne.s32.totalorder %s31, %s34
      %p43 = scmp.eq.s32.totalorder %s26, 1
      %p44 = por %p42, %p43
      %p45 = scmp.ne.s32.totalorder %s34, %s35
      %p46 = scmp.eq.s32.totalorder %s26, 0
      %p47 = por %p45, %p46
      %p48 = scmp.ne.s32.totalorder %s34, %s35
      %p49 = scmp.eq.s32.totalorder %s27, 1
      %p50 = por %p48, %p49
      %p52 = scmp.ne.s32.totalorder %s35, %s51
      %p53 = scmp.eq.s32.totalorder %s27, 0
      %p54 = por %p52, %p53
      %s55 = ssub.s32 %s21, %s28
      %p56 = scmp.eq.s32.totalorder %s55, 0
      %s58 = sadd.s32 %s57, 1
      %s59 = scalar_select %p56, %s57, %s58
      %p62 = pneg %p56
      %p63 = scmp.eq.s32.totalorder %s21, 1
      %p64 = por %p62, %p63
      %p65 = scmp.ne.s32.totalorder %s57, %s60
      %p66 = scmp.eq.s32.totalorder %s21, 0
      %p67 = por %p65, %p66
      %p68 = scmp.ne.s32.totalorder %s57, %s60
      %p69 = scmp.eq.s32.totalorder %s26, 1
      %p70 = por %p68, %p69
      %p71 = scmp.ne.s32.totalorder %s60, %s61
      %p72 = scmp.eq.s32.totalorder %s26, 0
      %p73 = por %p71, %p72
      %p74 = scmp.ne.s32.totalorder %s60, %s61
      %p75 = scmp.eq.s32.totalorder %s27, 1
      %p76 = por %p74, %p75
      %p78 = scmp.ne.s32.totalorder %s61, %s77
      %p79 = scmp.eq.s32.totalorder %s27, 0
      %p80 = por %p78, %p79
      %s82 = sadd.s32 %s81, 1
      %p85 = scmp.eq.s32.totalorder %s21, 1
      %p86 = scmp.ne.s32.totalorder %s81, %s83
      %p87 = scmp.eq.s32.totalorder %s21, 0
      %p88 = por %p86, %p87
      %p89 = scmp.ne.s32.totalorder %s81, %s83
      %p90 = scmp.eq.s32.totalorder %s26, 1
      %p91 = por %p89, %p90
      %p92 = scmp.ne.s32.totalorder %s83, %s84
      %p93 = scmp.eq.s32.totalorder %s26, 0
      %p94 = por %p92, %p93
      %p95 = scmp.ne.s32.totalorder %s83, %s84
      %p96 = scmp.eq.s32.totalorder %s27, 1
      %p97 = por %p95, %p96
      %p99 = scmp.ne.s32.totalorder %s84, %s98
      %p100 = scmp.eq.s32.totalorder %s27, 0
      %p101 = por %p99, %p100
      %s103 = sadd.s32 %s102, 1
      %p106 = scmp.eq.s32.totalorder %s21, 1
      %p107 = scmp.ne.s32.totalorder %s102, %s104
      %p108 = scmp.eq.s32.totalorder %s21, 0
      %p109 = por %p107, %p108
      %p110 = scmp.ne.s32.totalorder %s102, %s104
      %p111 = scmp.eq.s32.totalorder %s26, 1
      %p112 = por %p110, %p111
      %p113 = scmp.ne.s32.totalorder %s104, %s105
      %p114 = scmp.eq.s32.totalorder %s26, 0
      %p115 = por %p113, %p114
      %p116 = scmp.ne.s32.totalorder %s104, %s105
      %p117 = scmp.eq.s32.totalorder %s27, 1
      %p118 = por %p116, %p117
      %p120 = scmp.ne.s32.totalorder %s105, %s119
      %p121 = scmp.eq.s32.totalorder %s27, 0
      %p122 = por %p120, %p121
      %s124 = sadd.s32 %s123, 1
      %p127 = scmp.eq.s32.totalorder %s21, 1
      %p128 = scmp.ne.s32.totalorder %s123, %s125
      %p129 = scmp.eq.s32.totalorder %s21, 0
      %p130 = por %p128, %p129
      %p131 = scmp.ne.s32.totalorder %s123, %s125
      %p132 = scmp.eq.s32.totalorder %s26, 1
      %p133 = por %p131, %p132
      %p134 = scmp.ne.s32.totalorder %s125, %s126
      %p135 = scmp.eq.s32.totalorder %s26, 0
      %p136 = por %p134, %p135
      %p137 = scmp.ne.s32.totalorder %s125, %s126
      %p138 = scmp.eq.s32.totalorder %s27, 1
      %p139 = por %p137, %p138
      %p141 = scmp.ne.s32.totalorder %s126, %s140
      %p142 = scmp.eq.s32.totalorder %s27, 0
      %p143 = por %p141, %p142
      %s145 = sadd.s32 %s144, 1
      %p148 = scmp.eq.s32.totalorder %s21, 1
      %p149 = scmp.ne.s32.totalorder %s144, %s146
      %p150 = scmp.eq.s32.totalorder %s21, 0
      %p151 = por %p149, %p150
      %p152 = scmp.ne.s32.totalorder %s144, %s146
      %p153 = scmp.eq.s32.totalorder %s26, 1
      %p154 = por %p152, %p153
      %p155 = scmp.ne.s32.totalorder %s146, %s147
      %p156 = scmp.eq.s32.totalorder %s26, 0
      %p157 = por %p155, %p156
      %p158 = scmp.ne.s32.totalorder %s146, %s147
      %p159 = scmp.eq.s32.totalorder %s27, 1
      %p160 = por %p158, %p159
      %p162 = scmp.ne.s32.totalorder %s147, %s161
      %p163 = scmp.eq.s32.totalorder %s27, 0
      %p164 = por %p162, %p163
      %s165 = ssub.s32 %s21, %s28
      %p166 = scmp.eq.s32.totalorder %s165, 0
      %s168 = sadd.s32 %s167, 1
      %s169 = scalar_select %p166, %s167, %s168
      %p172 = pneg %p166
      %p173 = scmp.eq.s32.totalorder %s21, 1
      %p174 = por %p172, %p173
      %p175 = scmp.ne.s32.totalorder %s167, %s170
      %p176 = scmp.eq.s32.totalorder %s21, 0
      %p177 = por %p175, %p176
      %p178 = scmp.ne.s32.totalorder %s167, %s170
      %p179 = scmp.eq.s32.totalorder %s26, 1
      %p180 = por %p178, %p179
      %p181 = scmp.ne.s32.totalorder %s170, %s171
      %p182 = scmp.eq.s32.totalorder %s26, 0
      %p183 = por %p181, %p182
      %p184 = scmp.ne.s32.totalorder %s170, %s171
      %p185 = scmp.eq.s32.totalorder %s27, 1
      %p186 = por %p184, %p185
      %p188 = scmp.ne.s32.totalorder %s171, %s187
      %p189 = scmp.eq.s32.totalorder %s27, 0
      %p190 = por %p188, %p189
      %p191 = scmp.le.s32.totalorder 1, %s21
      %p192 = scmp.lt.s32.totalorder %s21, 3
      %p193 = pnand %p191, %p192
      %p194 = pneg %p193
      // Predicated region
      $region9: #{tpu_custom_call.1} parent=5 // pred_check
        _
      $region10: #{tpu_custom_call.1} parent=5 // pred_check_branch
        %196 = sbr.rel (%p193) target = $region12
      $region11: #{tpu_custom_call.1} parent=5 // pred_region
        %s197 = ssub.s32 %s21, 1
        // Predicated region
        $region13: #{tpu_custom_call.1} parent=11 // pred_check
          %p198 = pneg %p94
        $region14: #{tpu_custom_call.1} parent=11 // pred_check_branch
          %200 = sbr.rel (%p198) target = $region16
        $region15: #{tpu_custom_call.1} parent=11 // pred_region
          %s202 = ssub.s32 4096, 4096
          %203 = vsyncadd [#allocation6], %s202
          %s204 = sshll.u32 [#allocation7], 4
          %s205 = int_to_ptr.vmem [resolvable:$true] %s204
          %210 = dma.hbm_to_vmem [thread:$0]  %s2, 4096, %s205, [#allocation6], 64, 64, 4
        $region16: #{tpu_custom_call.1} parent=11 // pred_fallthru
          _
        // Predicated region
        $region17: #{tpu_custom_call.1} parent=11 // pred_check
          %p211 = pneg %p115
        $region18: #{tpu_custom_call.1} parent=11 // pred_check_branch
          %213 = sbr.rel (%p211) target = $region20
        $region19: #{tpu_custom_call.1} parent=11 // pred_region
          _
        $region20: #{tpu_custom_call.1} parent=11 // pred_fallthru
          _
        // Predicated region
        $region21: #{tpu_custom_call.1} parent=11 // pred_check
          %p214 = pneg %p136
        $region22: #{tpu_custom_call.1} parent=11 // pred_check_branch
          %216 = sbr.rel (%p214) target = $region24
        $region23: #{tpu_custom_call.1} parent=11 // pred_region
          _
        $region24: #{tpu_custom_call.1} parent=11 // pred_fallthru
          _
        // Predicated region
        $region25: #{tpu_custom_call.1} parent=11 // pred_check
          %p217 = pneg %p157
        $region26: #{tpu_custom_call.1} parent=11 // pred_check_branch
          %219 = sbr.rel (%p217) target = $region28
        $region27: #{tpu_custom_call.1} parent=11 // pred_region
          _
        $region28: #{tpu_custom_call.1} parent=11 // pred_fallthru
          _
      $region12: #{tpu_custom_call.1} parent=5 // pred_fallthru
        _
      %p220 = scmp.lt.s32.totalorder %s21, 2
      // Predicated region
      $region29: #{tpu_custom_call.1} parent=5 // pred_check
        %p221 = pneg %p220
      $region30: #{tpu_custom_call.1} parent=5 // pred_check_branch
        %223 = sbr.rel (%p221) target = $region32
      $region31: #{tpu_custom_call.1} parent=5 // pred_region
        // Predicated region
        $region33: #{tpu_custom_call.1} parent=31 // pred_check
          %p224 = pneg %p41
        $region34: #{tpu_custom_call.1} parent=31 // pred_check_branch
          %226 = sbr.rel (%p224) target = $region36
        $region35: #{tpu_custom_call.1} parent=31 // pred_region
          %s227 = sand.u32 %s31, 1
          %s228 = scalar_lea.sflag [#allocation3], %s227
          %s229 = sand.u32 %s31, 1
          %s230 = smul.addr %s229, 32
          %s231 = scalar_lea.vmem [#allocation2], %s230
          %s233 = ssub.s32 512, 512
          %234 = vsyncadd %s228, %s233
          %s235 = smul.addr %s21, 4
          %s236 = smul.addr %s235, 128
          %s237 = scalar_lea.hbm %s0, %s236
          %s239 = sshll.u32 %s231, 4
          %s240 = int_to_ptr.vmem [resolvable:$true] %s239
          %242 = dma.hbm_to_vmem [thread:$0]  %s237, 512, %s240, %s228
        $region36: #{tpu_custom_call.1} parent=31 // pred_fallthru
          _
        // Predicated region
        $region37: #{tpu_custom_call.1} parent=31 // pred_check
          %p243 = pneg %p67
        $region38: #{tpu_custom_call.1} parent=31 // pred_check_branch
          %245 = sbr.rel (%p243) target = $region40
        $region39: #{tpu_custom_call.1} parent=31 // pred_region
          %s246 = sand.u32 %s21, 1
          %s247 = scalar_lea.sflag [#allocation6], %s246
          %s248 = sand.u32 %s57, 1
          %s249 = smul.addr %s248, 8
          %s250 = scalar_lea.vmem [#allocation5], %s249
          %s252 = ssub.s32 128, 128
          %253 = vsyncadd %s247, %s252
          %s254 = smul.addr %s21, 128
          %s255 = scalar_lea.hbm %s1, %s254
          %s257 = sshll.u32 %s250, 4
          %s258 = int_to_ptr.vmem [resolvable:$true] %s257
          %260 = dma.hbm_to_vmem [thread:$0]  %s255, 128, %s258, %s247
        $region40: #{tpu_custom_call.1} parent=31 // pred_fallthru
          _
      $region32: #{tpu_custom_call.1} parent=5 // pred_fallthru
        _
      %p261 = scmp.le.s32.totalorder 1, %s21
      %p262 = scmp.lt.s32.totalorder %s21, 3
      %p263 = pnand %p261, %p262
      %p264 = pneg %p263
      // Predicated region
      $region41: #{tpu_custom_call.1} parent=5 // pred_check
        _
      $region42: #{tpu_custom_call.1} parent=5 // pred_check_branch
        %266 = sbr.rel (%p263) target = $region44
      $region43: #{tpu_custom_call.1} parent=5 // pred_region
        %s267 = ssub.s32 %s21, 1
        %s268 = sand.u32 %s34, 1
        %s269 = scalar_lea.sflag [#allocation3], %s268
        %s270 = sand.u32 %s34, 1
        %s271 = smul.addr %s270, 32
        %s272 = scalar_lea.vmem [#allocation2], %s271
        // Predicated region
        $region45: #{tpu_custom_call.1} parent=43 // pred_check
          %p273 = pneg %p47
        $region46: #{tpu_custom_call.1} parent=43 // pred_check_branch
          %275 = sbr.rel (%p273) target = $region48
        $region47: #{tpu_custom_call.1} parent=43 // pred_region
          %276 = dma.done %s269, 512
        $region48: #{tpu_custom_call.1} parent=43 // pred_fallthru
          _
        %s277 = sand.u32 %s26, 1
        %s278 = scalar_lea.sflag [#allocation6], %s277
        %s279 = sand.u32 %s60, 1
        %s280 = smul.addr %s279, 8
        %s281 = scalar_lea.vmem [#allocation5], %s280
        // Predicated region
        $region49: #{tpu_custom_call.1} parent=43 // pred_check
          %p282 = pneg %p73
        $region50: #{tpu_custom_call.1} parent=43 // pred_check_branch
          %284 = sbr.rel (%p282) target = $region52
        $region51: #{tpu_custom_call.1} parent=43 // pred_region
          %285 = dma.done %s278, 128
        $region52: #{tpu_custom_call.1} parent=43 // pred_fallthru
          _
        // Predicated region
        $region53: #{tpu_custom_call.1} parent=43 // pred_check
          %p286 = pneg %p94
        $region54: #{tpu_custom_call.1} parent=43 // pred_check_branch
          %288 = sbr.rel (%p286) target = $region56
        $region55: #{tpu_custom_call.1} parent=43 // pred_region
          %289 = dma.done [#allocation6], 4096
        $region56: #{tpu_custom_call.1} parent=43 // pred_fallthru
          _
        %s290 = sand.u32 %s34, 1
        %s291 = scalar_lea.sflag [#allocation3], %s290
        %s292 = sand.u32 %s34, 1
        %s293 = smul.addr %s292, 32
        %s294 = scalar_lea.vmem [#allocation2], %s293
        %p295 = pneg %p47
        %p296 = pneg %p44
        %s297 = sand.u32 %s26, 1
        %s298 = scalar_lea.sflag [#allocation6], %s297
        %s299 = sand.u32 %s60, 1
        %s300 = smul.addr %s299, 8
        %s301 = scalar_lea.vmem [#allocation5], %s300
        %p302 = pneg %p73
        %p303 = pneg %p70
        %p304 = pneg %p94
        %p305 = pneg %p91
        %p306 = pneg %p115
        %p307 = pneg %p112
        %p308 = pneg %p136
        %p309 = pneg %p133
        %p310 = pneg %p157
        %p311 = pneg %p154
        %p312 = pneg %p183
        %p313 = pneg %p180
        %s314 = sand.u32 %s170, 1
        %s315 = scalar_lea.sflag [#allocation4], %s314
        %s316 = sand.u32 %s170, 1
        %s317 = smul.addr %s316, 8
        %s318 = scalar_lea.vmem [#allocation8], %s317
        %v320 = vld [vmem:[%s272] sm:$0xff]
        %v321 = vld [vmem:[%s272 + $0x8] sm:$0xff]
        %v322 = vld [vmem:[%s272 + $0x10] sm:$0xff]
        %v323 = vld [vmem:[%s272 + $0x18] sm:$0xff]
        %v324 = vpack.c.bf16 %v320, %v320
        %v325 = vpack.c.bf16 %v321, %v321
        %v326 = vpack.c.bf16 %v322, %v322
        %v327 = vpack.c.bf16 %v323, %v323
        %v328 = vld [vmem:[#allocation7] sm:$0xf]
        %v329 = vld [vmem:[#allocation7 + $0x4] sm:$0xf]
        %v330 = vld [vmem:[#allocation7 + $0x8] sm:$0xf]
        %v331 = vld [vmem:[#allocation7 + $0xc] sm:$0xf]
        %v332 = vld [vmem:[#allocation7 + $0x10] sm:$0xf]
        %v333 = vld [vmem:[#allocation7 + $0x14] sm:$0xf]
        %v334 = vld [vmem:[#allocation7 + $0x18] sm:$0xf]
        %v335 = vld [vmem:[#allocation7 + $0x1c] sm:$0xf]
        %v336 = vld [vmem:[#allocation7 + $0x20] sm:$0xf]
        %v337 = vld [vmem:[#allocation7 + $0x24] sm:$0xf]
        %v338 = vld [vmem:[#allocation7 + $0x28] sm:$0xf]
        %v339 = vld [vmem:[#allocation7 + $0x2c] sm:$0xf]
        %v340 = vld [vmem:[#allocation7 + $0x30] sm:$0xf]
        %v341 = vld [vmem:[#allocation7 + $0x34] sm:$0xf]
        %v342 = vld [vmem:[#allocation7 + $0x38] sm:$0xf]
        %v343 = vld [vmem:[#allocation7 + $0x3c] sm:$0xf]
        %v344 = vld [vmem:[#allocation7 + $0x40] sm:$0xf]
        %v345 = vld [vmem:[#allocation7 + $0x44] sm:$0xf]
        %v346 = vld [vmem:[#allocation7 + $0x48] sm:$0xf]
        %v347 = vld [vmem:[#allocation7 + $0x4c] sm:$0xf]
        %v348 = vld [vmem:[#allocation7 + $0x50] sm:$0xf]
        %v349 = vld [vmem:[#allocation7 + $0x54] sm:$0xf]
        %v350 = vld [vmem:[#allocation7 + $0x58] sm:$0xf]
        %v351 = vld [vmem:[#allocation7 + $0x5c] sm:$0xf]
        %v352 = vld [vmem:[#allocation7 + $0x60] sm:$0xf]
        %v353 = vld [vmem:[#allocation7 + $0x64] sm:$0xf]
        %v354 = vld [vmem:[#allocation7 + $0x68] sm:$0xf]
        %v355 = vld [vmem:[#allocation7 + $0x6c] sm:$0xf]
        %v356 = vld [vmem:[#allocation7 + $0x70] sm:$0xf]
        %v357 = vld [vmem:[#allocation7 + $0x74] sm:$0xf]
        %v358 = vld [vmem:[#allocation7 + $0x78] sm:$0xf]
        %v359 = vld [vmem:[#allocation7 + $0x7c] sm:$0xf]
        %v360 = vld [vmem:[#allocation7 + $0x80] sm:$0xf]
        %v361 = vld [vmem:[#allocation7 + $0x84] sm:$0xf]
        %v362 = vld [vmem:[#allocation7 + $0x88] sm:$0xf]
        %v363 = vld [vmem:[#allocation7 + $0x8c] sm:$0xf]
        %v364 = vld [vmem:[#allocation7 + $0x90] sm:$0xf]
        %v365 = vld [vmem:[#allocation7 + $0x94] sm:$0xf]
        %v366 = vld [vmem:[#allocation7 + $0x98] sm:$0xf]
        %v367 = vld [vmem:[#allocation7 + $0x9c] sm:$0xf]
        %v368 = vld [vmem:[#allocation7 + $0xa0] sm:$0xf]
        %v369 = vld [vmem:[#allocation7 + $0xa4] sm:$0xf]
        %v370 = vld [vmem:[#allocation7 + $0xa8] sm:$0xf]
        %v371 = vld [vmem:[#allocation7 + $0xac] sm:$0xf]
        %v372 = vld [vmem:[#allocation7 + $0xb0] sm:$0xf]
        %v373 = vld [vmem:[#allocation7 + $0xb4] sm:$0xf]
        %v374 = vld [vmem:[#allocation7 + $0xb8] sm:$0xf]
        %v375 = vld [vmem:[#allocation7 + $0xbc] sm:$0xf]
        %v376 = vld [vmem:[#allocation7 + $0xc0] sm:$0xf]
        %v377 = vld [vmem:[#allocation7 + $0xc4] sm:$0xf]
        %v378 = vld [vmem:[#allocation7 + $0xc8] sm:$0xf]
        %v379 = vld [vmem:[#allocation7 + $0xcc] sm:$0xf]
        %v380 = vld [vmem:[#allocation7 + $0xd0] sm:$0xf]
        %v381 = vld [vmem:[#allocation7 + $0xd4] sm:$0xf]
        %v382 = vld [vmem:[#allocation7 + $0xd8] sm:$0xf]
        %v383 = vld [vmem:[#allocation7 + $0xdc] sm:$0xf]
        %v384 = vld [vmem:[#allocation7 + $0xe0] sm:$0xf]
        %v385 = vld [vmem:[#allocation7 + $0xe4] sm:$0xf]
        %v386 = vld [vmem:[#allocation7 + $0xe8] sm:$0xf]
        %v387 = vld [vmem:[#allocation7 + $0xec] sm:$0xf]
        %v388 = vld [vmem:[#allocation7 + $0xf0] sm:$0xf]
        %v389 = vld [vmem:[#allocation7 + $0xf4] sm:$0xf]
        %v390 = vld [vmem:[#allocation7 + $0xf8] sm:$0xf]
        %v391 = vld [vmem:[#allocation7 + $0xfc] sm:$0xf]
        %v392 = vld [vmem:[%s3] sm:$0x1]
        %v394 = vlaneseq
        %v395 = vshrl.u32 %v394, 7
        %v396 = vsub.s32 0, %v395
        %v397 = vrot.slane %v392, %v396
        %v463 = vunpack.c.l.b16 %v328
        %v464 = vunpack.c.l.b16 %v329
        %v465 = vunpack.c.l.b16 %v330
        %v466 = vunpack.c.l.b16 %v331
        %v467 = vunpack.c.l.b16 %v332
        %v468 = vunpack.c.l.b16 %v333
        %v469 = vunpack.c.l.b16 %v334
        %v470 = vunpack.c.l.b16 %v335
        %v471 = vunpack.c.l.b16 %v336
        %v472 = vunpack.c.l.b16 %v337
        %v473 = vunpack.c.l.b16 %v338
        %v474 = vunpack.c.l.b16 %v339
        %v475 = vunpack.c.l.b16 %v340
        %v476 = vunpack.c.l.b16 %v341
        %v477 = vunpack.c.l.b16 %v342
        %v478 = vunpack.c.l.b16 %v343
        %v479 = vunpack.c.l.b16 %v344
        %v480 = vunpack.c.l.b16 %v345
        %v481 = vunpack.c.l.b16 %v346
        %v482 = vunpack.c.l.b16 %v347
        %v483 = vunpack.c.l.b16 %v348
        %v484 = vunpack.c.l.b16 %v349
        %v485 = vunpack.c.l.b16 %v350
        %v486 = vunpack.c.l.b16 %v351
        %v487 = vunpack.c.l.b16 %v352
        %v488 = vunpack.c.l.b16 %v353
        %v489 = vunpack.c.l.b16 %v354
        %v490 = vunpack.c.l.b16 %v355
        %v491 = vunpack.c.l.b16 %v356
        %v492 = vunpack.c.l.b16 %v357
        %v493 = vunpack.c.l.b16 %v358
        %v494 = vunpack.c.l.b16 %v359
        %v495 = vunpack.c.l.b16 %v360
        %v496 = vunpack.c.l.b16 %v361
        %v497 = vunpack.c.l.b16 %v362
        %v498 = vunpack.c.l.b16 %v363
        %v499 = vunpack.c.l.b16 %v364
        %v500 = vunpack.c.l.b16 %v365
        %v501 = vunpack.c.l.b16 %v366
        %v502 = vunpack.c.l.b16 %v367
        %v503 = vunpack.c.l.b16 %v368
        %v504 = vunpack.c.l.b16 %v369
        %v505 = vunpack.c.l.b16 %v370
        %v506 = vunpack.c.l.b16 %v371
        %v507 = vunpack.c.l.b16 %v372
        %v508 = vunpack.c.l.b16 %v373
        %v509 = vunpack.c.l.b16 %v374
        %v510 = vunpack.c.l.b16 %v375
        %v511 = vunpack.c.l.b16 %v376
        %v512 = vunpack.c.l.b16 %v377
        %v513 = vunpack.c.l.b16 %v378
        %v514 = vunpack.c.l.b16 %v379
        %v515 = vunpack.c.l.b16 %v380
        %v516 = vunpack.c.l.b16 %v381
        %v517 = vunpack.c.l.b16 %v382
        %v518 = vunpack.c.l.b16 %v383
        %v519 = vunpack.c.l.b16 %v384
        %v520 = vunpack.c.l.b16 %v385
        %v521 = vunpack.c.l.b16 %v386
        %v522 = vunpack.c.l.b16 %v387
        %v523 = vunpack.c.l.b16 %v388
        %v524 = vunpack.c.l.b16 %v389
        %v525 = vunpack.c.l.b16 %v390
        %v526 = vunpack.c.l.b16 %v391
        %v527 = vpack.c.b16 %v464, %v463
        %v528 = vpack.c.b16 %v466, %v465
        %v529 = vpack.c.b16 %v468, %v467
        %v530 = vpack.c.b16 %v470, %v469
        %v531 = vpack.c.b16 %v472, %v471
        %v532 = vpack.c.b16 %v474, %v473
        %v533 = vpack.c.b16 %v476, %v475
        %v534 = vpack.c.b16 %v478, %v477
        %v535 = vpack.c.b16 %v480, %v479
        %v536 = vpack.c.b16 %v482, %v481
        %v537 = vpack.c.b16 %v484, %v483
        %v538 = vpack.c.b16 %v486, %v485
        %v539 = vpack.c.b16 %v488, %v487
        %v540 = vpack.c.b16 %v490, %v489
        %v541 = vpack.c.b16 %v492, %v491
        %v542 = vpack.c.b16 %v494, %v493
        %v543 = vpack.c.b16 %v496, %v495
        %v544 = vpack.c.b16 %v498, %v497
        %v545 = vpack.c.b16 %v500, %v499
        %v546 = vpack.c.b16 %v502, %v501
        %v547 = vpack.c.b16 %v504, %v503
        %v548 = vpack.c.b16 %v506, %v505
        %v549 = vpack.c.b16 %v508, %v507
        %v550 = vpack.c.b16 %v510, %v509
        %v551 = vpack.c.b16 %v512, %v511
        %v552 = vpack.c.b16 %v514, %v513
        %v553 = vpack.c.b16 %v516, %v515
        %v554 = vpack.c.b16 %v518, %v517
        %v555 = vpack.c.b16 %v520, %v519
        %v556 = vpack.c.b16 %v522, %v521
        %v557 = vpack.c.b16 %v524, %v523
        %v558 = vpack.c.b16 %v526, %v525
        %591 = vmatprep.subr.bf16.mxu0 0
        %592 = vmatpush1.bf16.msra.mxu0 %v534
        %593 = vmatprep.subr.bf16.mxu0 0
        %594 = vmatpush1.bf16.msra.mxu0 %v533
        %595 = vmatprep.subr.bf16.mxu0 0
        %596 = vmatpush1.bf16.msra.mxu0 %v532
        %597 = vmatprep.subr.bf16.mxu0 0
        %598 = vmatpush1.bf16.msra.mxu0 %v531
        %599 = vmatprep.subr.bf16.mxu0 0
        %600 = vmatpush1.bf16.msra.mxu0 %v530
        %601 = vmatprep.subr.bf16.mxu0 0
        %602 = vmatpush1.bf16.msra.mxu0 %v529
        %603 = vmatprep.subr.bf16.mxu0 0
        %604 = vmatpush1.bf16.msra.mxu0 %v528
        %605 = vmatprep.subr.bf16.mxu0 0
        %606 = vmatpush1.bf16.msra.mxu0 %v527
        %607 = vmatprep.subr.bf16.mxu0 0
        %608 = vmatpush2.bf16.msra.mxu0 %v542
        %609 = vmatprep.subr.bf16.mxu0 0
        %610 = vmatpush2.bf16.msra.mxu0 %v541
        %611 = vmatprep.subr.bf16.mxu0 0
        %612 = vmatpush2.bf16.msra.mxu0 %v540
        %613 = vmatprep.subr.bf16.mxu0 0
        %614 = vmatpush2.bf16.msra.mxu0 %v539
        %615 = vmatprep.subr.bf16.mxu0 0
        %616 = vmatpush2.bf16.msra.mxu0 %v538
        %617 = vmatprep.subr.bf16.mxu0 0
        %618 = vmatpush2.bf16.msra.mxu0 %v537
        %619 = vmatprep.subr.bf16.mxu0 0
        %620 = vmatpush2.bf16.msra.mxu0 %v536
        %621 = vmatprep.subr.bf16.mxu0 0
        %622 = vmatpush2.bf16.msra.mxu0 %v535
        %623 = vmatprep.mubr.bf16.mxu0 %v325
        %624 = vmatmul.mubr.bf16.gmra.mxu0 %v324
        %v625 = vpop.f32.mrf.mxu0
        %v626 = vadd.f32 %v397, %v625
        %v627 = vpop.f32.mrf.mxu0
        %v628 = vpop.f32.mrf.mxu0
        %v629 = vpop.f32.mrf.mxu0
        %630 = vdwg.mxu0
        %631 = vmatprep.subr.bf16.mxu0 0
        %632 = vmatpush1.bf16.msra.mxu0 %v550
        %633 = vmatprep.subr.bf16.mxu0 0
        %634 = vmatpush1.bf16.msra.mxu0 %v549
        %635 = vmatprep.subr.bf16.mxu0 0
        %636 = vmatpush1.bf16.msra.mxu0 %v548
        %637 = vmatprep.subr.bf16.mxu0 0
        %638 = vmatpush1.bf16.msra.mxu0 %v547
        %639 = vmatprep.subr.bf16.mxu0 0
        %640 = vmatpush1.bf16.msra.mxu0 %v546
        %641 = vmatprep.subr.bf16.mxu0 0
        %642 = vmatpush1.bf16.msra.mxu0 %v545
        %643 = vmatprep.subr.bf16.mxu0 0
        %644 = vmatpush1.bf16.msra.mxu0 %v544
        %645 = vmatprep.subr.bf16.mxu0 0
        %646 = vmatpush1.bf16.msra.mxu0 %v543
        %647 = vmatprep.subr.bf16.mxu0 0
        %648 = vmatpush2.bf16.msra.mxu0 %v558
        %649 = vmatprep.subr.bf16.mxu0 0
        %650 = vmatpush2.bf16.msra.mxu0 %v557
        %651 = vmatprep.subr.bf16.mxu0 0
        %652 = vmatpush2.bf16.msra.mxu0 %v556
        %653 = vmatprep.subr.bf16.mxu0 0
        %654 = vmatpush2.bf16.msra.mxu0 %v555
        %655 = vmatprep.subr.bf16.mxu0 0
        %656 = vmatpush2.bf16.msra.mxu0 %v554
        %657 = vmatprep.subr.bf16.mxu0 0
        %658 = vmatpush2.bf16.msra.mxu0 %v553
        %659 = vmatprep.subr.bf16.mxu0 0
        %660 = vmatpush2.bf16.msra.mxu0 %v552
        %661 = vmatprep.subr.bf16.mxu0 0
        %662 = vmatpush2.bf16.msra.mxu0 %v551
        %663 = vmatprep.mubr.bf16.mxu0 %v327
        %664 = vmatmul.mubr.bf16.gmra.mxu0 %v326
        %v665 = vpop.f32.mrf.mxu0
        %v666 = vadd.f32 %v626, %v665
        %v667 = vpop.f32.mrf.mxu0
        %v668 = vpop.f32.mrf.mxu0
        %v669 = vpop.f32.mrf.mxu0
        %670 = vdwg.mxu0
        %v671 = vld [vmem:[%s281] sm:$0xff]
        %v672 = vadd.f32 %v666, %v671
        %673 = vadd.xlane.f32.xlu0 %v672
        %v674 = vpop.xlane.xlu0 %673
        %v675 = vrcp.pop 128.0
        %v676 = vmul.f32 %v674, %v675
        %v677 = vsub.f32 %v672, %v676
        %v678 = vmul.f32 %v677, %v677
        %679 = vadd.xlane.f32.xlu0 %v678
        %v680 = vpop.xlane.xlu0 %679
        %v681 = vmul.f32 %v680, %v675
        %v682 = vadd.f32 %v681, 1e-12
        %v683 = vrsqrt.pop %v682
        %v684 = vmul.f32 %v677, %v683
        %v685 = vld [vmem:[%s4] sm:$0x1]
        %v687 = vlaneseq
        %v688 = vshrl.u32 %v687, 7
        %v689 = vsub.s32 0, %v688
        %v690 = vrot.slane %v685, %v689
        %v692 = vmul.f32 %v684, %v690
        %v693 = vld [vmem:[%s5] sm:$0x1]
        %v695 = vlaneseq
        %v696 = vshrl.u32 %v695, 7
        %v697 = vsub.s32 0, %v696
        %v698 = vrot.slane %v693, %v697
        %v700 = vadd.f32 %v692, %v698
        %701 = vst [vmem:[%s318] sm:$0xff] %v700
        %s702 = sand.u32 %s170, 1
        %s703 = scalar_lea.sflag [#allocation4], %s702
        %s704 = sand.u32 %s170, 1
        %s705 = smul.addr %s704, 8
        %s706 = scalar_lea.vmem [#allocation8], %s705
        // Predicated region
        $region57: #{tpu_custom_call.1} parent=43 // pred_check
          %p707 = pneg %p180
        $region58: #{tpu_custom_call.1} parent=43 // pred_check_branch
          %709 = sbr.rel (%p707) target = $region60
        $region59: #{tpu_custom_call.1} parent=43 // pred_region
          %s711 = ssub.s32 128, 128
          %712 = vsyncadd %s703, %s711
          %s713 = smul.addr %s26, 128
          %s714 = scalar_lea.hbm %s6, %s713
          %s716 = sshll.u32 %s706, 4
          %s717 = int_to_ptr.vmem [resolvable:$true] %s716
          %719 = dma.vmem_to_hbm [thread:$0]  %s717, 128, %s714, %s703
        $region60: #{tpu_custom_call.1} parent=43 // pred_fallthru
          _
      $region44: #{tpu_custom_call.1} parent=5 // pred_fallthru
        _
      %p720 = scmp.le.s32.totalorder 2, %s21
      // Predicated region
      $region61: #{tpu_custom_call.1} parent=5 // pred_check
        %p721 = pneg %p720
      $region62: #{tpu_custom_call.1} parent=5 // pred_check_branch
        %723 = sbr.rel (%p721) target = $region64
      $region63: #{tpu_custom_call.1} parent=5 // pred_region
        %s724 = ssub.s32 %s21, 2
        // Predicated region
        $region65: #{tpu_custom_call.1} parent=63 // pred_check
          %p725 = pneg %p186
        $region66: #{tpu_custom_call.1} parent=63 // pred_check_branch
          %727 = sbr.rel (%p725) target = $region68
        $region67: #{tpu_custom_call.1} parent=63 // pred_region
          %s728 = sand.u32 %s171, 1
          %s729 = scalar_lea.sflag [#allocation4], %s728
          %s730 = sand.u32 %s171, 1
          %s731 = smul.addr %s730, 8
          %s732 = scalar_lea.vmem [#allocation8], %s731
          %733 = dma.done %s729, 128
        $region68: #{tpu_custom_call.1} parent=63 // pred_fallthru
          _
      $region64: #{tpu_custom_call.1} parent=5 // pred_fallthru
        _
    $region6: #{tpu_custom_call.1} parent=1 // loop_footer
      %s25 = sadd.s32 1, %s21
    $region7: #{tpu_custom_call.1} parent=1 // loop_footer_branch
      %20 = sbr.rel target = $region3
    $region8: #{tpu_custom_call.1} parent=1 // loop_exit
      _
    %734 = vsyncpa [#allocation3], 1
    %s735 = scalar_lea.sflag [#allocation3], 1
    %736 = vsyncpa %s735, 1
    %737 = vsyncpa [#allocation6], 1
    %s738 = scalar_lea.sflag [#allocation6], 1
    %739 = vsyncpa %s738, 1
    %740 = vsyncpa [#allocation4], 1
    %s741 = scalar_lea.sflag [#allocation4], 1
    %742 = vsyncpa %s741, 1

// kernel: tpu_custom_call.1
$region0: #{tpu_custom_call.1}
  #allocation0 [shape = 'u32[]', space=smem, size = 0x4, offset = 0x4, fixed_abs, tag = 'smem constant byte address 0x4 - core index']
  #allocation1 [shape = 'u32[144,128]{1,0:T(1,128)}', space=vmem, size = 0x12000, scoped, tag = 'internal scratch']
  %s0 = inlined_call_operand.hbm [shape: f32[16,512], index: 0, kind: input, shape index: {}]
  %s1 = inlined_call_operand.hbm [shape: f32[16,128], index: 1, kind: input, shape index: {}]
  %s2 = inlined_call_operand.hbm [shape: bf16[512,128], index: 2, kind: input, shape index: {}]
  %s3 = inlined_call_operand.vmem [shape: f32[1,128], index: 3, kind: input, shape index: {}]
  %s4 = inlined_call_operand.vmem [shape: f32[1,128], index: 4, kind: input, shape index: {}]
  %s5 = inlined_call_operand.vmem [shape: f32[1,128], index: 5, kind: input, shape index: {}]
  %s6 = inlined_call_operand.hbm [shape: f32[16,128], index: 6, kind: output, shape index: {}]
  %s7 = sld [smem:[#allocation0]]
  $region69: #{tpu_custom_call.1} parent=0
    _
  %s9 = ssub.s32 1, %s7
  %s10 = scalar_select 0, %s9, %s7
  $region1: #{tpu_custom_call.1} parent=0
    #allocation2 [shape = 'u8[32768]{0}', space=vmem, size = 0x8000, scoped, tag = 'input window, operand 0']
    #allocation3 [shape = 's32[2]{0}', space=sflag, size = 0x8, scoped, tag = 'scoped memory for tpu_custom_call.1']
    #allocation4 [shape = 's32[2]{0}', space=sflag, size = 0x8, scoped, tag = 'scoped memory for tpu_custom_call.1']
    #allocation5 [shape = 'u8[8192]{0}', space=vmem, size = 0x2000, scoped, tag = 'input window, operand 1']
    #allocation6 [shape = 's32[2]{0}', space=sflag, size = 0x8, scoped, tag = 'scoped memory for tpu_custom_call.1']
    #allocation7 [shape = 'u8[131072]{0}', space=vmem, size = 0x20000, scoped, tag = 'input window, operand 2, single buffered']
    #allocation8 [shape = 'u8[8192]{0}', space=vmem, size = 0x2000, scoped, tag = 'output window, operand 0']
    %11 = vsyncpa [#allocation3], 0
    %s12 = scalar_lea.sflag [#allocation3], 1
    %13 = vsyncpa %s12, 0
    %14 = vsyncpa [#allocation6], 0
    %s15 = scalar_lea.sflag [#allocation6], 1
    %16 = vsyncpa %s15, 0
    %17 = vsyncpa [#allocation4], 0
    %s18 = scalar_lea.sflag [#allocation4], 1
    %19 = vsyncpa %s18, 0
    loop: start=0, step=1, limit=4
    $region2: #{tpu_custom_call.1} parent=1 // loop_pre_header
      _
    $region3: #{tpu_custom_call.1} parent=1 // loop_header
      %s21 = sphi 0, %s25
      %p22 = scmp.ge.s32.totalorder %s21, 4
      %s31 = sphi 0, %s33
      %s34 = sphi 0, %s31
      %s35 = sphi 0, %s34
      %s51 = sphi 0, %s35
      %s57 = sphi 0, %s59
      %s60 = sphi 0, %s57
      %s61 = sphi 0, %s60
      %s77 = sphi 0, %s61
      %s81 = sphi 0, %s81
      %s83 = sphi 0, %s81
      %s84 = sphi 0, %s83
      %s98 = sphi 0, %s84
      %s102 = sphi 0, %s102
      %s104 = sphi 0, %s102
      %s105 = sphi 0, %s104
      %s119 = sphi 0, %s105
      %s123 = sphi 0, %s123
      %s125 = sphi 0, %s123
      %s126 = sphi 0, %s125
      %s140 = sphi 0, %s126
      %s144 = sphi 0, %s144
      %s146 = sphi 0, %s144
      %s147 = sphi 0, %s146
      %s161 = sphi 0, %s147
      %s167 = sphi 0, %s169
      %s170 = sphi 0, %s167
      %s171 = sphi 0, %s170
      %s187 = sphi 0, %s171
    $region4: #{tpu_custom_call.1} parent=1 // loop_header_branch
      %24 = sbr.rel (%p22) target = $region8
    $region5: #{tpu_custom_call.1} parent=1 // loop_body
      %s26 = ssub.s32 %s21, 1
      %s27 = ssub.s32 %s21, 2
      %s28 = sadd.s32 %s21, 1
      %s29 = ssub.s32 %s21, %s28
      %p30 = scmp.eq.s32.totalorder %s29, 0
      %s32 = sadd.s32 %s31, 1
      %s33 = scalar_select %p30, %s31, %s32
      %p36 = pneg %p30
      %p37 = scmp.eq.s32.totalorder %s21, 1
      %p38 = por %p36, %p37
      %p39 = scmp.ne.s32.totalorder %s31, %s34
      %p40 = scmp.eq.s32.totalorder %s21, 0
      %p41 = por %p39, %p40
      %p42 = scmp.ne.s32.totalorder %s31, %s34
      %p43 = scmp.eq.s32.totalorder %s26, 1
      %p44 = por %p42, %p43
      %p45 = scmp.ne.s32.totalorder %s34, %s35
      %p46 = scmp.eq.s32.totalorder %s26, 0
      %p47 = por %p45, %p46
      %p48 = scmp.ne.s32.totalorder %s34, %s35
      %p49 = scmp.eq.s32.totalorder %s27, 1
      %p50 = por %p48, %p49
      %p52 = scmp.ne.s32.totalorder %s35, %s51
      %p53 = scmp.eq.s32.totalorder %s27, 0
      %p54 = por %p52, %p53
      %s55 = ssub.s32 %s21, %s28
      %p56 = scmp.eq.s32.totalorder %s55, 0
      %s58 = sadd.s32 %s57, 1
      %s59 = scalar_select %p56, %s57, %s58
      %p62 = pneg %p56
      %p63 = scmp.eq.s32.totalorder %s21, 1
      %p64 = por %p62, %p63
      %p65 = scmp.ne.s32.totalorder %s57, %s60
      %p66 = scmp.eq.s32.totalorder %s21, 0
      %p67 = por %p65, %p66
      %p68 = scmp.ne.s32.totalorder %s57, %s60
      %p69 = scmp.eq.s32.totalorder %s26, 1
      %p70 = por %p68, %p69
      %p71 = scmp.ne.s32.totalorder %s60, %s61
      %p72 = scmp.eq.s32.totalorder %s26, 0
      %p73 = por %p71, %p72
      %p74 = scmp.ne.s32.totalorder %s60, %s61
      %p75 = scmp.eq.s32.totalorder %s27, 1
      %p76 = por %p74, %p75
      %p78 = scmp.ne.s32.totalorder %s61, %s77
      %p79 = scmp.eq.s32.totalorder %s27, 0
      %p80 = por %p78, %p79
      %s82 = sadd.s32 %s81, 1
      %p85 = scmp.eq.s32.totalorder %s21, 1
      %p86 = scmp.ne.s32.totalorder %s81, %s83
      %p87 = scmp.eq.s32.totalorder %s21, 0
      %p88 = por %p86, %p87
      %p89 = scmp.ne.s32.totalorder %s81, %s83
      %p90 = scmp.eq.s32.totalorder %s26, 1
      %p91 = por %p89, %p90
      %p92 = scmp.ne.s32.totalorder %s83, %s84
      %p93 = scmp.eq.s32.totalorder %s26, 0
      %p94 = por %p92, %p93
      %p95 = scmp.ne.s32.totalorder %s83, %s84
      %p96 = scmp.eq.s32.totalorder %s27, 1
      %p97 = por %p95, %p96
      %p99 = scmp.ne.s32.totalorder %s84, %s98
      %p100 = scmp.eq.s32.totalorder %s27, 0
      %p101 = por %p99, %p100
      %s103 = sadd.s32 %s102, 1
      %p106 = scmp.eq.s32.totalorder %s21, 1
      %p107 = scmp.ne.s32.totalorder %s102, %s104
      %p108 = scmp.eq.s32.totalorder %s21, 0
      %p109 = por %p107, %p108
      %p110 = scmp.ne.s32.totalorder %s102, %s104
      %p111 = scmp.eq.s32.totalorder %s26, 1
      %p112 = por %p110, %p111
      %p113 = scmp.ne.s32.totalorder %s104, %s105
      %p114 = scmp.eq.s32.totalorder %s26, 0
      %p115 = por %p113, %p114
      %p116 = scmp.ne.s32.totalorder %s104, %s105
      %p117 = scmp.eq.s32.totalorder %s27, 1
      %p118 = por %p116, %p117
      %p120 = scmp.ne.s32.totalorder %s105, %s119
      %p121 = scmp.eq.s32.totalorder %s27, 0
      %p122 = por %p120, %p121
      %s124 = sadd.s32 %s123, 1
      %p127 = scmp.eq.s32.totalorder %s21, 1
      %p128 = scmp.ne.s32.totalorder %s123, %s125
      %p129 = scmp.eq.s32.totalorder %s21, 0
      %p130 = por %p128, %p129
      %p131 = scmp.ne.s32.totalorder %s123, %s125
      %p132 = scmp.eq.s32.totalorder %s26, 1
      %p133 = por %p131, %p132
      %p134 = scmp.ne.s32.totalorder %s125, %s126
      %p135 = scmp.eq.s32.totalorder %s26, 0
      %p136 = por %p134, %p135
      %p137 = scmp.ne.s32.totalorder %s125, %s126
      %p138 = scmp.eq.s32.totalorder %s27, 1
      %p139 = por %p137, %p138
      %p141 = scmp.ne.s32.totalorder %s126, %s140
      %p142 = scmp.eq.s32.totalorder %s27, 0
      %p143 = por %p141, %p142
      %s145 = sadd.s32 %s144, 1
      %p148 = scmp.eq.s32.totalorder %s21, 1
      %p149 = scmp.ne.s32.totalorder %s144, %s146
      %p150 = scmp.eq.s32.totalorder %s21, 0
      %p151 = por %p149, %p150
      %p152 = scmp.ne.s32.totalorder %s144, %s146
      %p153 = scmp.eq.s32.totalorder %s26, 1
      %p154 = por %p152, %p153
      %p155 = scmp.ne.s32.totalorder %s146, %s147
      %p156 = scmp.eq.s32.totalorder %s26, 0
      %p157 = por %p155, %p156
      %p158 = scmp.ne.s32.totalorder %s146, %s147
      %p159 = scmp.eq.s32.totalorder %s27, 1
      %p160 = por %p158, %p159
      %p162 = scmp.ne.s32.totalorder %s147, %s161
      %p163 = scmp.eq.s32.totalorder %s27, 0
      %p164 = por %p162, %p163
      %s165 = ssub.s32 %s21, %s28
      %p166 = scmp.eq.s32.totalorder %s165, 0
      %s168 = sadd.s32 %s167, 1
      %s169 = scalar_select %p166, %s167, %s168
      %p172 = pneg %p166
      %p173 = scmp.eq.s32.totalorder %s21, 1
      %p174 = por %p172, %p173
      %p175 = scmp.ne.s32.totalorder %s167, %s170
      %p176 = scmp.eq.s32.totalorder %s21, 0
      %p177 = por %p175, %p176
      %p178 = scmp.ne.s32.totalorder %s167, %s170
      %p179 = scmp.eq.s32.totalorder %s26, 1
      %p180 = por %p178, %p179
      %p181 = scmp.ne.s32.totalorder %s170, %s171
      %p182 = scmp.eq.s32.totalorder %s26, 0
      %p183 = por %p181, %p182
      %p184 = scmp.ne.s32.totalorder %s170, %s171
      %p185 = scmp.eq.s32.totalorder %s27, 1
      %p186 = por %p184, %p185
      %p188 = scmp.ne.s32.totalorder %s171, %s187
      %p189 = scmp.eq.s32.totalorder %s27, 0
      %p190 = por %p188, %p189
      %p191 = scmp.le.s32.totalorder 1, %s21
      %p192 = scmp.lt.s32.totalorder %s21, 3
      %p193 = pnand %p191, %p192
      %p194 = pneg %p193
      // Predicated region
      $region9: #{tpu_custom_call.1} parent=5 // pred_check
        _
      $region10: #{tpu_custom_call.1} parent=5 // pred_check_branch
        %196 = sbr.rel (%p193) target = $region12
      $region11: #{tpu_custom_call.1} parent=5 // pred_region
        %s197 = ssub.s32 %s21, 1
        // Predicated region
        $region13: #{tpu_custom_call.1} parent=11 // pred_check
          %p198 = pneg %p94
        $region14: #{tpu_custom_call.1} parent=11 // pred_check_branch
          %200 = sbr.rel (%p198) target = $region16
        $region15: #{tpu_custom_call.1} parent=11 // pred_region
          %s202 = ssub.s32 4096, 4096
          %203 = vsyncadd [#allocation6], %s202
          %s204 = sshll.u32 [#allocation7], 4
          %s205 = int_to_ptr.vmem [resolvable:$true] %s204
          %210 = dma.hbm_to_vmem [thread:$0]  %s2, 4096, %s205, [#allocation6], 64, 64, 4
        $region16: #{tpu_custom_call.1} parent=11 // pred_fallthru
          _
        // Predicated region
        $region17: #{tpu_custom_call.1} parent=11 // pred_check
          %p211 = pneg %p115
        $region18: #{tpu_custom_call.1} parent=11 // pred_check_branch
          %213 = sbr.rel (%p211) target = $region20
        $region19: #{tpu_custom_call.1} parent=11 // pred_region
          _
        $region20: #{tpu_custom_call.1} parent=11 // pred_fallthru
          _
        // Predicated region
        $region21: #{tpu_custom_call.1} parent=11 // pred_check
          %p214 = pneg %p136
        $region22: #{tpu_custom_call.1} parent=11 // pred_check_branch
          %216 = sbr.rel (%p214) target = $region24
        $region23: #{tpu_custom_call.1} parent=11 // pred_region
          _
        $region24: #{tpu_custom_call.1} parent=11 // pred_fallthru
          _
        // Predicated region
        $region25: #{tpu_custom_call.1} parent=11 // pred_check
          %p217 = pneg %p157
        $region26: #{tpu_custom_call.1} parent=11 // pred_check_branch
          %219 = sbr.rel (%p217) target = $region28
        $region27: #{tpu_custom_call.1} parent=11 // pred_region
          _
        $region28: #{tpu_custom_call.1} parent=11 // pred_fallthru
          _
      $region12: #{tpu_custom_call.1} parent=5 // pred_fallthru
        _
      %p220 = scmp.lt.s32.totalorder %s21, 2
      // Predicated region
      $region29: #{tpu_custom_call.1} parent=5 // pred_check
        %p221 = pneg %p220
      $region30: #{tpu_custom_call.1} parent=5 // pred_check_branch
        %223 = sbr.rel (%p221) target = $region32
      $region31: #{tpu_custom_call.1} parent=5 // pred_region
        // Predicated region
        $region33: #{tpu_custom_call.1} parent=31 // pred_check
          %p224 = pneg %p41
        $region34: #{tpu_custom_call.1} parent=31 // pred_check_branch
          %226 = sbr.rel (%p224) target = $region36
        $region35: #{tpu_custom_call.1} parent=31 // pred_region
          %s227 = sand.u32 %s31, 1
          %s228 = scalar_lea.sflag [#allocation3], %s227
          %s229 = sand.u32 %s31, 1
          %s230 = smul.addr %s229, 32
          %s231 = scalar_lea.vmem [#allocation2], %s230
          %s233 = ssub.s32 512, 512
          %234 = vsyncadd %s228, %s233
          %s235 = smul.addr %s21, 4
          %s236 = smul.addr %s235, 128
          %s237 = scalar_lea.hbm %s0, %s236
          %s239 = sshll.u32 %s231, 4
          %s240 = int_to_ptr.vmem [resolvable:$true] %s239
          %242 = dma.hbm_to_vmem [thread:$0]  %s237, 512, %s240, %s228
        $region36: #{tpu_custom_call.1} parent=31 // pred_fallthru
          _
        // Predicated region
        $region37: #{tpu_custom_call.1} parent=31 // pred_check
          %p243 = pneg %p67
        $region38: #{tpu_custom_call.1} parent=31 // pred_check_branch
          %245 = sbr.rel (%p243) target = $region40
        $region39: #{tpu_custom_call.1} parent=31 // pred_region
          %s246 = sand.u32 %s21, 1
          %s247 = scalar_lea.sflag [#allocation6], %s246
          %s248 = sand.u32 %s57, 1
          %s249 = smul.addr %s248, 8
          %s250 = scalar_lea.vmem [#allocation5], %s249
          %s252 = ssub.s32 128, 128
          %253 = vsyncadd %s247, %s252
          %s254 = smul.addr %s21, 128
          %s255 = scalar_lea.hbm %s1, %s254
          %s257 = sshll.u32 %s250, 4
          %s258 = int_to_ptr.vmem [resolvable:$true] %s257
          %260 = dma.hbm_to_vmem [thread:$0]  %s255, 128, %s258, %s247
        $region40: #{tpu_custom_call.1} parent=31 // pred_fallthru
          _
      $region32: #{tpu_custom_call.1} parent=5 // pred_fallthru
        _
      %p261 = scmp.le.s32.totalorder 1, %s21
      %p262 = scmp.lt.s32.totalorder %s21, 3
      %p263 = pnand %p261, %p262
      %p264 = pneg %p263
      // Predicated region
      $region41: #{tpu_custom_call.1} parent=5 // pred_check
        _
      $region42: #{tpu_custom_call.1} parent=5 // pred_check_branch
        %266 = sbr.rel (%p263) target = $region44
      $region43: #{tpu_custom_call.1} parent=5 // pred_region
        %s267 = ssub.s32 %s21, 1
        %s268 = sand.u32 %s34, 1
        %s269 = scalar_lea.sflag [#allocation3], %s268
        %s270 = sand.u32 %s34, 1
        %s271 = smul.addr %s270, 32
        %s272 = scalar_lea.vmem [#allocation2], %s271
        // Predicated region
        $region45: #{tpu_custom_call.1} parent=43 // pred_check
          %p273 = pneg %p47
        $region46: #{tpu_custom_call.1} parent=43 // pred_check_branch
          %275 = sbr.rel (%p273) target = $region48
        $region47: #{tpu_custom_call.1} parent=43 // pred_region
          %276 = dma.done %s269, 512
        $region48: #{tpu_custom_call.1} parent=43 // pred_fallthru
          _
        %s277 = sand.u32 %s26, 1
        %s278 = scalar_lea.sflag [#allocation6], %s277
        %s279 = sand.u32 %s60, 1
        %s280 = smul.addr %s279, 8
        %s281 = scalar_lea.vmem [#allocation5], %s280
        // Predicated region
        $region49: #{tpu_custom_call.1} parent=43 // pred_check
          %p282 = pneg %p73
        $region50: #{tpu_custom_call.1} parent=43 // pred_check_branch
          %284 = sbr.rel (%p282) target = $region52
        $region51: #{tpu_custom_call.1} parent=43 // pred_region
          %285 = dma.done %s278, 128
        $region52: #{tpu_custom_call.1} parent=43 // pred_fallthru
          _
        // Predicated region
        $region53: #{tpu_custom_call.1} parent=43 // pred_check
          %p286 = pneg %p94
        $region54: #{tpu_custom_call.1} parent=43 // pred_check_branch
          %288 = sbr.rel (%p286) target = $region56
        $region55: #{tpu_custom_call.1} parent=43 // pred_region
          %289 = dma.done [#allocation6], 4096
        $region56: #{tpu_custom_call.1} parent=43 // pred_fallthru
          _
        %s290 = sand.u32 %s34, 1
        %s291 = scalar_lea.sflag [#allocation3], %s290
        %s292 = sand.u32 %s34, 1
        %s293 = smul.addr %s292, 32
        %s294 = scalar_lea.vmem [#allocation2], %s293
        %p295 = pneg %p47
        %p296 = pneg %p44
        %s297 = sand.u32 %s26, 1
        %s298 = scalar_lea.sflag [#allocation6], %s297
        %s299 = sand.u32 %s60, 1
        %s300 = smul.addr %s299, 8
        %s301 = scalar_lea.vmem [#allocation5], %s300
        %p302 = pneg %p73
        %p303 = pneg %p70
        %p304 = pneg %p94
        %p305 = pneg %p91
        %p306 = pneg %p115
        %p307 = pneg %p112
        %p308 = pneg %p136
        %p309 = pneg %p133
        %p310 = pneg %p157
        %p311 = pneg %p154
        %p312 = pneg %p183
        %p313 = pneg %p180
        %s314 = sand.u32 %s170, 1
        %s315 = scalar_lea.sflag [#allocation4], %s314
        %s316 = sand.u32 %s170, 1
        %s317 = smul.addr %s316, 8
        %s318 = scalar_lea.vmem [#allocation8], %s317
        %v320 = vld [vmem:[%s272] sm:$0xff]
        %v321 = vld [vmem:[%s272 + $0x8] sm:$0xff]
        %v322 = vld [vmem:[%s272 + $0x10] sm:$0xff]
        %v323 = vld [vmem:[%s272 + $0x18] sm:$0xff]
        %v324 = vpack.c.bf16 %v320, %v320
        %v325 = vpack.c.bf16 %v321, %v321
        %v326 = vpack.c.bf16 %v322, %v322
        %v327 = vpack.c.bf16 %v323, %v323
        %v328 = vld [vmem:[#allocation7] sm:$0xf]
        %v329 = vld [vmem:[#allocation7 + $0x4] sm:$0xf]
        %v330 = vld [vmem:[#allocation7 + $0x8] sm:$0xf]
        %v331 = vld [vmem:[#allocation7 + $0xc] sm:$0xf]
        %v332 = vld [vmem:[#allocation7 + $0x10] sm:$0xf]
        %v333 = vld [vmem:[#allocation7 + $0x14] sm:$0xf]
        %v334 = vld [vmem:[#allocation7 + $0x18] sm:$0xf]
        %v335 = vld [vmem:[#allocation7 + $0x1c] sm:$0xf]
        %v336 = vld [vmem:[#allocation7 + $0x20] sm:$0xf]
        %v337 = vld [vmem:[#allocation7 + $0x24] sm:$0xf]
        %v338 = vld [vmem:[#allocation7 + $0x28] sm:$0xf]
        %v339 = vld [vmem:[#allocation7 + $0x2c] sm:$0xf]
        %v340 = vld [vmem:[#allocation7 + $0x30] sm:$0xf]
        %v341 = vld [vmem:[#allocation7 + $0x34] sm:$0xf]
        %v342 = vld [vmem:[#allocation7 + $0x38] sm:$0xf]
        %v343 = vld [vmem:[#allocation7 + $0x3c] sm:$0xf]
        %v344 = vld [vmem:[#allocation7 + $0x40] sm:$0xf]
        %v345 = vld [vmem:[#allocation7 + $0x44] sm:$0xf]
        %v346 = vld [vmem:[#allocation7 + $0x48] sm:$0xf]
        %v347 = vld [vmem:[#allocation7 + $0x4c] sm:$0xf]
        %v348 = vld [vmem:[#allocation7 + $0x50] sm:$0xf]
        %v349 = vld [vmem:[#allocation7 + $0x54] sm:$0xf]
        %v350 = vld [vmem:[#allocation7 + $0x58] sm:$0xf]
        %v351 = vld [vmem:[#allocation7 + $0x5c] sm:$0xf]
        %v352 = vld [vmem:[#allocation7 + $0x60] sm:$0xf]
        %v353 = vld [vmem:[#allocation7 + $0x64] sm:$0xf]
        %v354 = vld [vmem:[#allocation7 + $0x68] sm:$0xf]
        %v355 = vld [vmem:[#allocation7 + $0x6c] sm:$0xf]
        %v356 = vld [vmem:[#allocation7 + $0x70] sm:$0xf]
        %v357 = vld [vmem:[#allocation7 + $0x74] sm:$0xf]
        %v358 = vld [vmem:[#allocation7 + $0x78] sm:$0xf]
        %v359 = vld [vmem:[#allocation7 + $0x7c] sm:$0xf]
        %v360 = vld [vmem:[#allocation7 + $0x80] sm:$0xf]
        %v361 = vld [vmem:[#allocation7 + $0x84] sm:$0xf]
        %v362 = vld [vmem:[#allocation7 + $0x88] sm:$0xf]
        %v363 = vld [vmem:[#allocation7 + $0x8c] sm:$0xf]
        %v364 = vld [vmem:[#allocation7 + $0x90] sm:$0xf]
        %v365 = vld [vmem:[#allocation7 + $0x94] sm:$0xf]
        %v366 = vld [vmem:[#allocation7 + $0x98] sm:$0xf]
        %v367 = vld [vmem:[#allocation7 + $0x9c] sm:$0xf]
        %v368 = vld [vmem:[#allocation7 + $0xa0] sm:$0xf]
        %v369 = vld [vmem:[#allocation7 + $0xa4] sm:$0xf]
        %v370 = vld [vmem:[#allocation7 + $0xa8] sm:$0xf]
        %v371 = vld [vmem:[#allocation7 + $0xac] sm:$0xf]
        %v372 = vld [vmem:[#allocation7 + $0xb0] sm:$0xf]
        %v373 = vld [vmem:[#allocation7 + $0xb4] sm:$0xf]
        %v374 = vld [vmem:[#allocation7 + $0xb8] sm:$0xf]
        %v375 = vld [vmem:[#allocation7 + $0xbc] sm:$0xf]
        %v376 = vld [vmem:[#allocation7 + $0xc0] sm:$0xf]
        %v377 = vld [vmem:[#allocation7 + $0xc4] sm:$0xf]
        %v378 = vld [vmem:[#allocation7 + $0xc8] sm:$0xf]
        %v379 = vld [vmem:[#allocation7 + $0xcc] sm:$0xf]
        %v380 = vld [vmem:[#allocation7 + $0xd0] sm:$0xf]
        %v381 = vld [vmem:[#allocation7 + $0xd4] sm:$0xf]
        %v382 = vld [vmem:[#allocation7 + $0xd8] sm:$0xf]
        %v383 = vld [vmem:[#allocation7 + $0xdc] sm:$0xf]
        %v384 = vld [vmem:[#allocation7 + $0xe0] sm:$0xf]
        %v385 = vld [vmem:[#allocation7 + $0xe4] sm:$0xf]
        %v386 = vld [vmem:[#allocation7 + $0xe8] sm:$0xf]
        %v387 = vld [vmem:[#allocation7 + $0xec] sm:$0xf]
        %v388 = vld [vmem:[#allocation7 + $0xf0] sm:$0xf]
        %v389 = vld [vmem:[#allocation7 + $0xf4] sm:$0xf]
        %v390 = vld [vmem:[#allocation7 + $0xf8] sm:$0xf]
        %v391 = vld [vmem:[#allocation7 + $0xfc] sm:$0xf]
        %v392 = vld [vmem:[%s3] sm:$0x1]
        %v394 = vlaneseq
        %v395 = vshrl.u32 %v394, 7
        %v396 = vsub.s32 0, %v395
        %v397 = vrot.slane %v392, %v396
        %v463 = vunpack.c.l.b16 %v328
        %v464 = vunpack.c.l.b16 %v329
        %v465 = vunpack.c.l.b16 %v330
        %v466 = vunpack.c.l.b16 %v331
        %v467 = vunpack.c.l.b16 %v332
        %v468 = vunpack.c.l.b16 %v333
        %v469 = vunpack.c.l.b16 %v334
        %v470 = vunpack.c.l.b16 %v335
        %v471 = vunpack.c.l.b16 %v336
        %v472 = vunpack.c.l.b16 %v337
        %v473 = vunpack.c.l.b16 %v338
        %v474 = vunpack.c.l.b16 %v339
        %v475 = vunpack.c.l.b16 %v340
        %v476 = vunpack.c.l.b16 %v341
        %v477 = vunpack.c.l.b16 %v342
        %v478 = vunpack.c.l.b16 %v343
        %v479 = vunpack.c.l.b16 %v344
        %v480 = vunpack.c.l.b16 %v345
        %v481 = vunpack.c.l.b16 %v346
        %v482 = vunpack.c.l.b16 %v347
        %v483 = vunpack.c.l.b16 %v348
        %v484 = vunpack.c.l.b16 %v349
        %v485 = vunpack.c.l.b16 %v350
        %v486 = vunpack.c.l.b16 %v351
        %v487 = vunpack.c.l.b16 %v352
        %v488 = vunpack.c.l.b16 %v353
        %v489 = vunpack.c.l.b16 %v354
        %v490 = vunpack.c.l.b16 %v355
        %v491 = vunpack.c.l.b16 %v356
        %v492 = vunpack.c.l.b16 %v357
        %v493 = vunpack.c.l.b16 %v358
        %v494 = vunpack.c.l.b16 %v359
        %v495 = vunpack.c.l.b16 %v360
        %v496 = vunpack.c.l.b16 %v361
        %v497 = vunpack.c.l.b16 %v362
        %v498 = vunpack.c.l.b16 %v363
        %v499 = vunpack.c.l.b16 %v364
        %v500 = vunpack.c.l.b16 %v365
        %v501 = vunpack.c.l.b16 %v366
        %v502 = vunpack.c.l.b16 %v367
        %v503 = vunpack.c.l.b16 %v368
        %v504 = vunpack.c.l.b16 %v369
        %v505 = vunpack.c.l.b16 %v370
        %v506 = vunpack.c.l.b16 %v371
        %v507 = vunpack.c.l.b16 %v372
        %v508 = vunpack.c.l.b16 %v373
        %v509 = vunpack.c.l.b16 %v374
        %v510 = vunpack.c.l.b16 %v375
        %v511 = vunpack.c.l.b16 %v376
        %v512 = vunpack.c.l.b16 %v377
        %v513 = vunpack.c.l.b16 %v378
        %v514 = vunpack.c.l.b16 %v379
        %v515 = vunpack.c.l.b16 %v380
        %v516 = vunpack.c.l.b16 %v381
        %v517 = vunpack.c.l.b16 %v382
        %v518 = vunpack.c.l.b16 %v383
        %v519 = vunpack.c.l.b16 %v384
        %v520 = vunpack.c.l.b16 %v385
        %v521 = vunpack.c.l.b16 %v386
        %v522 = vunpack.c.l.b16 %v387
        %v523 = vunpack.c.l.b16 %v388
        %v524 = vunpack.c.l.b16 %v389
        %v525 = vunpack.c.l.b16 %v390
        %v526 = vunpack.c.l.b16 %v391
        %v527 = vpack.c.b16 %v464, %v463
        %v528 = vpack.c.b16 %v466, %v465
        %v529 = vpack.c.b16 %v468, %v467
        %v530 = vpack.c.b16 %v470, %v469
        %v531 = vpack.c.b16 %v472, %v471
        %v532 = vpack.c.b16 %v474, %v473
        %v533 = vpack.c.b16 %v476, %v475
        %v534 = vpack.c.b16 %v478, %v477
        %v535 = vpack.c.b16 %v480, %v479
        %v536 = vpack.c.b16 %v482, %v481
        %v537 = vpack.c.b16 %v484, %v483
        %v538 = vpack.c.b16 %v486, %v485
        %v539 = vpack.c.b16 %v488, %v487
        %v540 = vpack.c.b16 %v490, %v489
        %v541 = vpack.c.b16 %v492, %v491
        %v542 = vpack.c.b16 %v494, %v493
        %v543 = vpack.c.b16 %v496, %v495
        %v544 = vpack.c.b16 %v498, %v497
        %v545 = vpack.c.b16 %v500, %v499
        %v546 = vpack.c.b16 %v502, %v501
        %v547 = vpack.c.b16 %v504, %v503
        %v548 = vpack.c.b16 %v506, %v505
        %v549 = vpack.c.b16 %v508, %v507
        %v550 = vpack.c.b16 %v510, %v509
        %v551 = vpack.c.b16 %v512, %v511
        %v552 = vpack.c.b16 %v514, %v513
        %v553 = vpack.c.b16 %v516, %v515
        %v554 = vpack.c.b16 %v518, %v517
        %v555 = vpack.c.b16 %v520, %v519
        %v556 = vpack.c.b16 %v522, %v521
        %v557 = vpack.c.b16 %v524, %v523
        %v558 = vpack.c.b16 %v526, %v525
        %591 = vmatprep.subr.bf16.mxu0 0
        %592 = vmatpush1.bf16.msra.mxu0 %v534
        %593 = vmatprep.subr.bf16.mxu0 0
        %594 = vmatpush1.bf16.msra.mxu0 %v533
        %595 = vmatprep.subr.bf16.mxu0 0
        %596 = vmatpush1.bf16.msra.mxu0 %v532
        %597 = vmatprep.subr.bf16.mxu0 0
        %598 = vmatpush1.bf16.msra.mxu0 %v531
        %599 = vmatprep.subr.bf16.mxu0 0
        %600 = vmatpush1.bf16.msra.mxu0 %v530
        %601 = vmatprep.subr.bf16.mxu0 0
        %602 = vmatpush1.bf16.msra.mxu0 %v529
        %603 = vmatprep.subr.bf16.mxu0 0
        %604 = vmatpush1.bf16.msra.mxu0 %v528
        %605 = vmatprep.subr.bf16.mxu0 0
        %606 = vmatpush1.bf16.msra.mxu0 %v527
        %607 = vmatprep.subr.bf16.mxu0 0
        %608 = vmatpush2.bf16.msra.mxu0 %v542
        %609 = vmatprep.subr.bf16.mxu0 0
        %610 = vmatpush2.bf16.msra.mxu0 %v541
        %611 = vmatprep.subr.bf16.mxu0 0
        %612 = vmatpush2.bf16.msra.mxu0 %v540
        %613 = vmatprep.subr.bf16.mxu0 0
        %614 = vmatpush2.bf16.msra.mxu0 %v539
        %615 = vmatprep.subr.bf16.mxu0 0
        %616 = vmatpush2.bf16.msra.mxu0 %v538
        %617 = vmatprep.subr.bf16.mxu0 0
        %618 = vmatpush2.bf16.msra.mxu0 %v537
        %619 = vmatprep.subr.bf16.mxu0 0
        %620 = vmatpush2.bf16.msra.mxu0 %v536
        %621 = vmatprep.subr.bf16.mxu0 0
        %622 = vmatpush2.bf16.msra.mxu0 %v535
        %623 = vmatprep.mubr.bf16.mxu0 %v325
        %624 = vmatmul.mubr.bf16.gmra.mxu0 %v324
        %v625 = vpop.f32.mrf.mxu0
        %v626 = vadd.f32 %v397, %v625
        %v627 = vpop.f32.mrf.mxu0
        %v628 = vpop.f32.mrf.mxu0
        %v629 = vpop.f32.mrf.mxu0
        %630 = vdwg.mxu0
        %631 = vmatprep.subr.bf16.mxu0 0
        %632 = vmatpush1.bf16.msra.mxu0 %v550
        %633 = vmatprep.subr.bf16.mxu0 0
        %634 = vmatpush1.bf16.msra.mxu0 %v549
        %635 = vmatprep.subr.bf16.mxu0 0
        %636 = vmatpush1.bf16.msra.mxu0 %v548
        %637 = vmatprep.subr.bf16.mxu0 0
        %638 = vmatpush1.bf16.msra.mxu0 %v547
        %639 = vmatprep.subr.bf16.mxu0 0
        %640 = vmatpush1.bf16.msra.mxu0 %v546
        %641 = vmatprep.subr.bf16.mxu0 0
        %642 = vmatpush1.bf16.msra.mxu0 %v545
        %643 = vmatprep.subr.bf16.mxu0 0
        %644 = vmatpush1.bf16.msra.mxu0 %v544
        %645 = vmatprep.subr.bf16.mxu0 0
        %646 = vmatpush1.bf16.msra.mxu0 %v543
        %647 = vmatprep.subr.bf16.mxu0 0
        %648 = vmatpush2.bf16.msra.mxu0 %v558
        %649 = vmatprep.subr.bf16.mxu0 0
        %650 = vmatpush2.bf16.msra.mxu0 %v557
        %651 = vmatprep.subr.bf16.mxu0 0
        %652 = vmatpush2.bf16.msra.mxu0 %v556
        %653 = vmatprep.subr.bf16.mxu0 0
        %654 = vmatpush2.bf16.msra.mxu0 %v555
        %655 = vmatprep.subr.bf16.mxu0 0
        %656 = vmatpush2.bf16.msra.mxu0 %v554
        %657 = vmatprep.subr.bf16.mxu0 0
        %658 = vmatpush2.bf16.msra.mxu0 %v553
        %659 = vmatprep.subr.bf16.mxu0 0
        %660 = vmatpush2.bf16.msra.mxu0 %v552
        %661 = vmatprep.subr.bf16.mxu0 0
        %662 = vmatpush2.bf16.msra.mxu0 %v551
        %663 = vmatprep.mubr.bf16.mxu0 %v327
        %664 = vmatmul.mubr.bf16.gmra.mxu0 %v326
        %v665 = vpop.f32.mrf.mxu0
        %v666 = vadd.f32 %v626, %v665
        %v667 = vpop.f32.mrf.mxu0
        %v668 = vpop.f32.mrf.mxu0
        %v669 = vpop.f32.mrf.mxu0
        %670 = vdwg.mxu0
        %v671 = vld [vmem:[%s281] sm:$0xff]
        %v672 = vadd.f32 %v666, %v671
        %673 = vadd.xlane.f32.xlu0 %v672
        %v674 = vpop.xlane.xlu0 %673
        %v675 = vrcp.pop 128.0
        %v676 = vmul.f32 %v674, %v675
        %v677 = vsub.f32 %v672, %v676
        %v678 = vmul.f32 %v677, %v677
        %679 = vadd.xlane.f32.xlu0 %v678
        %v680 = vpop.xlane.xlu0 %679
        %v681 = vmul.f32 %v680, %v675
        %v682 = vadd.f32 %v681, 1e-12
        %v683 = vrsqrt.pop %v682
        %v684 = vmul.f32 %v677, %v683
        %v685 = vld [vmem:[%s4] sm:$0x1]
        %v687 = vlaneseq
        %v688 = vshrl.u32 %v687, 7
        %v689 = vsub.s32 0, %v688
        %v690 = vrot.slane %v685, %v689
        %v692 = vmul.f32 %v684, %v690
        %v693 = vld [vmem:[%s5] sm:$0x1]
        %v695 = vlaneseq
        %v696 = vshrl.u32 %v695, 7
        %v697 = vsub.s32 0, %v696
        %v698 = vrot.slane %v693, %v697
        %v700 = vadd.f32 %v692, %v698
        %701 = vst [vmem:[%s318] sm:$0xff] %v700
        %s702 = sand.u32 %s170, 1
        %s703 = scalar_lea.sflag [#allocation4], %s702
        %s704 = sand.u32 %s170, 1
        %s705 = smul.addr %s704, 8
        %s706 = scalar_lea.vmem [#allocation8], %s705
        // Predicated region
        $region57: #{tpu_custom_call.1} parent=43 // pred_check
          %p707 = pneg %p180
        $region58: #{tpu_custom_call.1} parent=43 // pred_check_branch
          %709 = sbr.rel (%p707) target = $region60
        $region59: #{tpu_custom_call.1} parent=43 // pred_region
          %s711 = ssub.s32 128, 128
          %712 = vsyncadd %s703, %s711
          %s713 = smul.addr %s26, 128
          %s714 = scalar_lea.hbm %s6, %s713
          %s716 = sshll.u32 %s706, 4
          %s717 = int_to_ptr.vmem [resolvable:$true] %s716
          %719 = dma.vmem_to_hbm [thread:$0]  %s717, 128, %s714, %s703
        $region60: #{tpu_custom_call.1} parent=43 // pred_fallthru
          _
      $region44: #{tpu_custom_call.1} parent=5 // pred_fallthru
        _
      %p720 = scmp.le.s32.totalorder 2, %s21
      // Predicated region
      $region61: #{tpu_custom_call.1} parent=5 // pred_check
        %p721 = pneg %p720
      $region62: #{tpu_custom_call.1} parent=5 // pred_check_branch
        %723 = sbr.rel (%p721) target = $region64
      $region63: #{tpu_custom_call.1} parent=5 // pred_region
        %s724 = ssub.s32 %s21, 2
        // Predicated region
        $region65: #{tpu_custom_call.1} parent=63 // pred_check
          %p725 = pneg %p186
        $region66: #{tpu_custom_call.1} parent=63 // pred_check_branch
          %727 = sbr.rel (%p725) target = $region68
        $region67: #{tpu_custom_call.1} parent=63 // pred_region
          %s728 = sand.u32 %s171, 1
          %s729 = scalar_lea.sflag [#allocation4], %s728
          %s730 = sand.u32 %s171, 1
          %s731 = smul.addr %s730, 8
          %s732 = scalar_lea.vmem [#allocation8], %s731
          %733 = dma.done %s729, 128
        $region68: #{tpu_custom_call.1} parent=63 // pred_fallthru
          _
      $region64: #{tpu_custom_call.1} parent=5 // pred_fallthru
        _
    $region6: #{tpu_custom_call.1} parent=1 // loop_footer
      %s25 = sadd.s32 1, %s21
    $region7: #{tpu_custom_call.1} parent=1 // loop_footer_branch
      %20 = sbr.rel target = $region3
    $region8: #{tpu_custom_call.1} parent=1 // loop_exit
      _
    %734 = vsyncpa [#allocation3], 1
    %s735 = scalar_lea.sflag [#allocation3], 1
    %736 = vsyncpa %s735, 1
    %737 = vsyncpa [#allocation6], 1
    %s738 = scalar_lea.sflag [#allocation6], 1
    %739 = vsyncpa %s738, 1
    %740 = vsyncpa [#allocation4], 1
    %s741 = scalar_lea.sflag [#allocation4], 1
    %742 = vsyncpa %s741, 1

</llo_original>
